<compile_context>
chip_gen: v7x
topology: tpu7x:2x2x1
jax: 0.10.0
libtpu: 0.0.40
codegen_flags: <defaults>
</compile_context>

<pallas_src>
import math
from functools import partial

import jax
import jax.numpy as jnp
from jax.experimental import pallas as pl
from jax.experimental.pallas import tpu as pltpu


def _layernorm(x, w, b, eps=1e-5):
    # PyTorch nn.LayerNorm semantics: biased variance, eps inside sqrt.
    mu = jnp.mean(x, axis=-1, keepdims=True)
    xc = x - mu
    var = jnp.mean(xc * xc, axis=-1, keepdims=True)
    return xc * jax.lax.rsqrt(var + eps) * w + b


def _gelu_exact(x):
    # nn.GELU() default (approximate='none'): 0.5*x*(1+erf(x/sqrt(2)))
    return 0.5 * x * (1.0 + jax.lax.erf(x * (1.0 / math.sqrt(2.0))))


def _vmem_limit():
    # Per-generation scoped-VMEM limit (leave headroom on v7x's 64 MiB).
    try:
        phys = int(pltpu.get_tpu_info().vmem_capacity_bytes)
    except Exception:
        phys = 128 * 1024 * 1024
    return min(96 * 1024 * 1024, (phys * 3) // 4)


# --------------------------------------------------------------------------
# Pass 1: x1 = x + proj(attn(LN1(x)))
# --------------------------------------------------------------------------
def attn_kernel(xf_ref,
                n1w_ref, n1b_ref,
                wq_ref, wkv_ref, projw_ref, projb_ref,
                o_ref,
                xn_sc, kv_sc, attn_sc,
                *, num_heads):
    C = o_ref.shape[-1]
    tq = o_ref.shape[1]
    hd = C // num_heads
    qi = pl.program_id(1)

    # LayerNorm of the whole sequence + KV projection computed once per batch
    # element; bf16 results persist in VMEM across the (arbitrary) q axis.
    @pl.when(qi == 0)
    def _():
        xf = xf_ref[0]                                            # (N, C) f32
        xn = _layernorm(xf, n1w_ref[...], n1b_ref[...]).astype(jnp.bfloat16)
        xn_sc[...] = xn
        kv_f32 = jnp.dot(xn, wkv_ref[...],
                         preferred_element_type=jnp.float32)      # (N, 2C)
        kv_sc[...] = kv_f32.astype(jnp.bfloat16)

    q0 = pl.multiple_of(qi * tq, tq)
    xq = xf_ref[0, pl.ds(q0, tq), :]                              # (tq, C) f32, residual
    xnq = xn_sc[pl.ds(q0, tq), :]                                 # (tq, C) bf16 (cached LN1)
    # qk scale is folded into wq at wrapper time.
    qb = jnp.dot(xnq, wq_ref[...],
                 preferred_element_type=jnp.float32).astype(jnp.bfloat16)

    kv = kv_sc[...]                                               # (N, 2C) bf16
    for h in range(num_heads):
        qh = qb[:, h * hd:(h + 1) * hd]                           # (tq, hd)
        kh = kv[:, h * hd:(h + 1) * hd]                           # (N, hd)
        vh = kv[:, C + h * hd:C + (h + 1) * hd]                   # (N, hd)
        s = jax.lax.dot_general(qh, kh, (((1,), (1,)), ((), ())),
                                preferred_element_type=jnp.float32)
        s = s - jnp.max(s, axis=-1, keepdims=True)                # f32 softmax
        e = jnp.exp(s)
        p = e * pl.reciprocal(jnp.sum(e, axis=-1, keepdims=True), approx=True)
        oh = jnp.dot(p.astype(jnp.bfloat16), vh,
                     preferred_element_type=jnp.float32)          # (tq, hd)
        attn_sc[:, h * hd:(h + 1) * hd] = oh.astype(jnp.bfloat16)

    # One fused (tq, C) @ (C, C) projection over the bf16 per-head slab.
    out = jnp.dot(attn_sc[...], projw_ref[...],
                  preferred_element_type=jnp.float32) + projb_ref[...]
    o_ref[0] = (xq + out).astype(o_ref.dtype)


# --------------------------------------------------------------------------
# Pass 2: out = x1 + fc2(GELU(dwconv3x3(fc1(LN2(x1)))))   (row-tiled)
# --------------------------------------------------------------------------
def ffn_kernel(x_ref,
               n2w_ref, n2b_ref,
               fc1w_ref, fc1b_ref,
               dww_ref, dwb_ref,
               fc2w_ref, fc2b_ref,
               o_ref,
               h1_sc,
               *, W, th):
    r = pl.program_id(1)
    nrow = pl.num_programs(1)
    Ch = h1_sc.shape[-1]
    nt = th * W                       # output tokens per row tile
    Ne = (th + 2) * W                 # tokens incl. 1-row halo top & bottom

    x1 = x_ref[0]                     # (N, C) f32, full seq (constant over r)
    tok0 = pl.multiple_of(r * nt, nt)

    n2w = n2w_ref[...]
    n2b = n2b_ref[...]
    fc1w = fc1w_ref[...]
    fc1b = fc1b_ref[...]

    def fc1_of(tokens_f32):
        xn = _layernorm(tokens_f32, n2w, n2b)
        return jnp.dot(xn.astype(jnp.bfloat16), fc1w,
                       preferred_element_type=jnp.float32) + fc1b

    # Middle rows of the halo buffer.
    xm = x1[pl.ds(tok0, nt), :]                                   # (nt, C) f32
    h1_sc[W:W + nt, :] = fc1_of(xm)

    # Top halo row (zero padding at the global top border).
    @pl.when(r == 0)
    def _():
        h1_sc[0:W, :] = jnp.zeros((W, Ch), jnp.float32)

    @pl.when(r > 0)
    def _():
        h1_sc[0:W, :] = fc1_of(x1[pl.ds(tok0 - W, W), :])

    # Bottom halo row (zero padding at the global bottom border).
    @pl.when(r == nrow - 1)
    def _():
        h1_sc[W + nt:2 * W + nt, :] = jnp.zeros((W, Ch), jnp.float32)

    @pl.when(r < nrow - 1)
    def _():
        h1_sc[W + nt:2 * W + nt, :] = fc1_of(x1[pl.ds(tok0 + nt, W), :])

    # 3x3 depthwise conv (stride 1, zero pad 1): column shifts via pltpu.roll
    # + iota masks on the halo buffer, row shifts via static halo slices.
    h1 = h1_sc[...]                                               # (Ne, Ch) f32
    tok = jax.lax.broadcasted_iota(jnp.int32, (Ne, 1), 0)
    col = tok % W

    def shift_w(t, dx):                                           # t'[y,x] = t[y, x+dx]
        if dx == 0:
            return t
        rr = pltpu.roll(t, (-dx) % Ne, axis=0)
        edge = (W - 1) if dx == 1 else 0
        return jnp.where(col == edge, 0.0, rr)

    w9 = dww_ref[...]                                             # (9, Ch) f32
    gx = (shift_w(h1, -1), h1, shift_w(h1, 1))                    # dx = -1, 0, +1

    acc = None
    for dy in (-1, 0, 1):
        off = (1 + dy) * W
        for dx in (-1, 0, 1):
            term = gx[dx + 1][off:off + nt, :] * w9[(dy + 1) * 3 + (dx + 1)]
            acc = term if acc is None else acc + term
    acc = acc + dwb_ref[...]

    h2 = _gelu_exact(acc)                                         # (nt, Ch) f32
    y = jnp.dot(h2.astype(jnp.bfloat16), fc2w_ref[...],
                preferred_element_type=jnp.float32) + fc2b_ref[...]
    o_ref[0] = (xm + y).astype(o_ref.dtype)


# --------------------------------------------------------------------------
# Wrapper
# --------------------------------------------------------------------------
def pvt_block(x, params, H, W, num_heads, tq=None, th=None):
    B, N, C = x.shape
    assert N == H * W
    Ch = params['fc1_w'].shape[1]
    hd = C // num_heads
    scale = hd ** -0.5

    if tq is None:
        tq = N
        for cand in (256, 128, 64, 32):
            if N % cand == 0:
                tq = cand
                break
    assert N % tq == 0 and (tq % 8 == 0 or tq == N)
    nq = N // tq

    if th is None:
        th = max(1, min(H, 256 // max(W, 1)))
        while H % th:
            th -= 1
    assert H % th == 0 and ((th * W) % 8 == 0 or th == H)
    nrow = H // th

    bf16 = jnp.bfloat16
    wq = (params['wq'] * scale).astype(bf16)      # qk scale folded into Wq
    wkv = params['wkv'].astype(bf16)
    projw = params['proj_w'].astype(bf16)
    fc1w = params['fc1_w'].astype(bf16)
    fc2w = params['fc2_w'].astype(bf16)

    def wspec(shape):
        # Constant-index operands: single-buffered, no wasted VMEM copy.
        return pl.BlockSpec(shape, lambda *_: (0,) * len(shape),
                            pipeline_mode=pl.Buffered(1))

    vmem_limit = _vmem_limit()

    # ---------------- pass 1: attention + residual ----------------
    attn_cost = pl.CostEstimate(
        flops=B * (8 * N * C * C + 4 * N * N * C),
        transcendentals=B * num_heads * N * N,
        bytes_accessed=2 * B * N * C * 4 + 8 * C * C)
    x1 = pl.pallas_call(
        partial(attn_kernel, num_heads=num_heads),
        out_shape=jax.ShapeDtypeStruct((B, N, C), x.dtype),
        grid_spec=pltpu.PrefetchScalarGridSpec(
            num_scalar_prefetch=0,
            grid=(B, nq),
            in_specs=[
                pl.BlockSpec((1, N, C), lambda b, q: (b, 0, 0)),   # x: full seq, read ONCE
                wspec((1, C)), wspec((1, C)),                      # norm1 w, b
                wspec((C, C)), wspec((C, 2 * C)),                  # wq (scaled, bf16), wkv (bf16)
                wspec((C, C)), wspec((1, C)),                      # proj w (bf16), b
            ],
            out_specs=pl.BlockSpec((1, tq, C), lambda b, q: (b, q, 0)),
            scratch_shapes=[
                pltpu.VMEM((N, C), jnp.bfloat16),                  # LN1(x) cache
                pltpu.VMEM((N, 2 * C), jnp.bfloat16),              # K/V cache
                pltpu.VMEM((tq, C), jnp.bfloat16),                 # per-head out slab
            ],
        ),
        compiler_params=pltpu.CompilerParams(
            # q axis must stay "arbitrary": the LN/KV scratch is filled at qi==0.
            dimension_semantics=("parallel", "arbitrary"),
            vmem_limit_bytes=vmem_limit),
        cost_estimate=attn_cost,
    )(x,
      params['n1_w'], params['n1_b'],
      wq, wkv, projw, params['proj_b'])

    # ---------------- pass 2: FFN + residual (row-tiled) ----------------
    ffn_cost = pl.CostEstimate(
        flops=B * (4 * N * C * Ch + 18 * N * Ch),
        transcendentals=B * N * Ch,
        bytes_accessed=2 * B * N * C * 4 + 4 * C * Ch + 40 * Ch)
    out = pl.pallas_call(
        partial(ffn_kernel, W=W, th=th),
        out_shape=jax.ShapeDtypeStruct((B, N, C), x.dtype),
        grid_spec=pltpu.PrefetchScalarGridSpec(
            num_scalar_prefetch=0,
            grid=(B, nrow),
            in_specs=[
                pl.BlockSpec((1, N, C), lambda b, r: (b, 0, 0)),   # x1: full seq (DMA once per b)
                wspec((1, C)), wspec((1, C)),                      # norm2 w, b
                wspec((C, Ch)), wspec((1, Ch)),                    # fc1 w (bf16), b
                wspec((9, Ch)), wspec((1, Ch)),                    # dwconv w (f32), b
                wspec((Ch, C)), wspec((1, C)),                     # fc2 w (bf16), b
            ],
            out_specs=pl.BlockSpec((1, th * W, C), lambda b, r: (b, r, 0)),
            scratch_shapes=[
                pltpu.VMEM(((th + 2) * W, Ch), jnp.float32),       # fc1 halo buffer
            ],
        ),
        compiler_params=pltpu.CompilerParams(
            dimension_semantics=("parallel", "parallel"),
            vmem_limit_bytes=vmem_limit),
        cost_estimate=ffn_cost,
    )(x1,
      params['n2_w'], params['n2_b'],
      fc1w, params['fc1_b'],
      params['dw_w'], params['dw_b'],
      fc2w, params['fc2_b'])
    return out


def make_params(key, C, num_heads, mlp_ratio=4.0):
    """Deterministic synthetic init following the module's __init__ shapes.

    Linear weights are stored as (in, out) so the kernel does x @ W.
    Depthwise conv weight is stored flattened as (9, hidden) = (ky*3+kx, ch).
    """
    Ch = int(C * mlp_ratio)
    ks = jax.random.split(key, 6)
    std = 0.02
    dw_std = math.sqrt(2.0 / 9.0)   # fan_out = 3*3*Ch / groups(=Ch) = 9
    return dict(
        n1_w=jnp.ones((1, C), jnp.float32),
        n1_b=jnp.zeros((1, C), jnp.float32),
        wq=std * jax.random.normal(ks[0], (C, C), jnp.float32),
        wkv=std * jax.random.normal(ks[1], (C, 2 * C), jnp.float32),
        proj_w=std * jax.random.normal(ks[2], (C, C), jnp.float32),
        proj_b=jnp.zeros((1, C), jnp.float32),
        n2_w=jnp.ones((1, C), jnp.float32),
        n2_b=jnp.zeros((1, C), jnp.float32),
        fc1_w=std * jax.random.normal(ks[3], (C, Ch), jnp.float32),
        fc1_b=jnp.zeros((1, Ch), jnp.float32),
        dw_w=dw_std * jax.random.normal(ks[4], (9, Ch), jnp.float32),
        dw_b=jnp.zeros((1, Ch), jnp.float32),
        fc2_w=std * jax.random.normal(ks[5], (Ch, C), jnp.float32),
        fc2_b=jnp.zeros((1, C), jnp.float32),
    )


def reference(x, p, H, W, num_heads):
    """Pure-JAX f32 reference mirroring the PyTorch Block forward (defaults)."""
    B, N, C = x.shape
    hd = C // num_heads
    scale = hd ** -0.5

    def ln(v, w, b):
        mu = v.mean(-1, keepdims=True)
        var = ((v - mu) ** 2).mean(-1, keepdims=True)
        return (v - mu) / jnp.sqrt(var + 1e-5) * w[0] + b[0]

    xn = ln(x, p['n1_w'], p['n1_b'])
    q = xn @ p['wq']
    kv = xn @ p['wkv']
    k, v = kv[..., :C], kv[..., C:]
    q = q.reshape(B, N, num_heads, hd).transpose(0, 2, 1, 3)
    k = k.reshape(B, N, num_heads, hd).transpose(0, 2, 1, 3)
    v = v.reshape(B, N, num_heads, hd).transpose(0, 2, 1, 3)
    a = jax.nn.softmax(jnp.einsum('bhqd,bhkd->bhqk', q, k) * scale, axis=-1)
    o = jnp.einsum('bhqk,bhkd->bhqd', a, v).transpose(0, 2, 1, 3).reshape(B, N, C)
    o = o @ p['proj_w'] + p['proj_b'][0]
    x1 = x + o

    xn2 = ln(x1, p['n2_w'], p['n2_b'])
    h1 = xn2 @ p['fc1_w'] + p['fc1_b'][0]
    Ch = h1.shape[-1]
    g = h1.reshape(B, H, W, Ch)
    gp = jnp.pad(g, ((0, 0), (1, 1), (1, 1), (0, 0)))
    acc = jnp.zeros_like(g)
    for dy in range(3):
        for dx in range(3):
            acc = acc + gp[:, dy:dy + H, dx:dx + W, :] * p['dw_w'][dy * 3 + dx]
    acc = acc + p['dw_b'][0]
    h2 = jax.nn.gelu(acc.reshape(B, N, Ch), approximate=False)
    y = h2 @ p['fc2_w'] + p['fc2_b'][0]
    return x1 + y


if __name__ == "__main__":
    B, H, W, C, num_heads = 2, 8, 8, 32, 4
    N = H * W
    key = jax.random.PRNGKey(0)
    kx, kp = jax.random.split(key)
    x = jax.random.normal(kx, (B, N, C), jnp.float32)
    params = make_params(kp, C, num_heads)

    # tq=32 -> 2 query tiles per batch element; th=4 -> 2 row tiles (exercises
    # both halo branches of the FFN kernel).
    out = pvt_block(x, params, H, W, num_heads, tq=32, th=4)
    out = jax.block_until_ready(out)

    ref = reference(x, params, H, W, num_heads)
    assert out.shape == (B, N, C)
    err = float(jnp.max(jnp.abs(out - ref)))
    # bf16 MXU operands + approx reciprocal -> looser tolerance than pure f32.
    assert err < 2e-2, f"max abs err {err}"
    print("KERNEL_OK")
</pallas_src>

<mosaic_0001>
module attributes {stable_mosaic.version = 11 : i64} {
  func.func @attn_kernel(%arg0: i32, %arg1: i32, %arg2: memref<1x64x32xf32, #tpu.memory_space<vmem>>, %arg3: memref<1x32xf32, #tpu.memory_space<vmem>>, %arg4: memref<1x32xf32, #tpu.memory_space<vmem>>, %arg5: memref<32x32xbf16, #tpu.memory_space<vmem>>, %arg6: memref<32x64xbf16, #tpu.memory_space<vmem>>, %arg7: memref<32x32xbf16, #tpu.memory_space<vmem>>, %arg8: memref<1x32xf32, #tpu.memory_space<vmem>>, %arg9: memref<1x32x32xf32, #tpu.memory_space<vmem>>, %arg10: memref<64x32xbf16, #tpu.memory_space<vmem>>, %arg11: memref<64x64xbf16, #tpu.memory_space<vmem>>, %arg12: memref<32x32xbf16, #tpu.memory_space<vmem>>) attributes {dimension_semantics = [#tpu.dimension_semantics<parallel>, #tpu.dimension_semantics<arbitrary>], iteration_bounds = array<i64: 2, 2>, scalar_prefetch = 0 : i64, scratch_operands = 3 : i64, tpu.core_type = #tpu.core_type<tc>, window_params = [{transform_indices = @transform_0, window_bounds = array<i64: 1, 64, 32>}, {pipeline_mode = #tpu.pipeline_mode<synchronous>, transform_indices = @transform_1, window_bounds = array<i64: 1, 32>}, {pipeline_mode = #tpu.pipeline_mode<synchronous>, transform_indices = @transform_2, window_bounds = array<i64: 1, 32>}, {pipeline_mode = #tpu.pipeline_mode<synchronous>, transform_indices = @transform_3, window_bounds = array<i64: 32, 32>}, {pipeline_mode = #tpu.pipeline_mode<synchronous>, transform_indices = @transform_4, window_bounds = array<i64: 32, 64>}, {pipeline_mode = #tpu.pipeline_mode<synchronous>, transform_indices = @transform_5, window_bounds = array<i64: 32, 32>}, {pipeline_mode = #tpu.pipeline_mode<synchronous>, transform_indices = @transform_6, window_bounds = array<i64: 1, 32>}, {transform_indices = @transform_7, window_bounds = array<i64: 1, 32, 32>}]} {
    %c0_i32 = arith.constant 0 : i32
    %0 = arith.cmpi eq, %arg1, %c0_i32 : i32
    %1 = arith.extui %0 : i1 to i32
    %c0_i32_0 = arith.constant 0 : i32
    %2 = arith.cmpi ne, %1, %c0_i32_0 : i32
    scf.if %2 {
      %c0_38 = arith.constant 0 : index
      %c0_39 = arith.constant 0 : index
      %c0_40 = arith.constant 0 : index
      %96 = vector.load %arg2[%c0_38, %c0_39, %c0_40] : memref<1x64x32xf32, #tpu.memory_space<vmem>>, vector<1x64x32xf32>
      %97 = vector.shape_cast %96 : vector<1x64x32xf32> to vector<64x32xf32>
      %c0_41 = arith.constant 0 : index
      %c0_42 = arith.constant 0 : index
      %98 = vector.load %arg3[%c0_41, %c0_42] : memref<1x32xf32, #tpu.memory_space<vmem>>, vector<1x32xf32>
      %c0_43 = arith.constant 0 : index
      %c0_44 = arith.constant 0 : index
      %99 = vector.load %arg4[%c0_43, %c0_44] : memref<1x32xf32, #tpu.memory_space<vmem>>, vector<1x32xf32>
      %cst_45 = arith.constant dense<0.000000e+00> : vector<64xf32>
      %100 = vector.multi_reduction <add>, %97, %cst_45 [1] : vector<64x32xf32> to vector<64xf32>
      %101 = vector.shape_cast %100 : vector<64xf32> to vector<64x1xf32>
      %cst_46 = arith.constant 3.200000e+01 : f32
      %102 = vector.broadcast %cst_46 : f32 to vector<64x1xf32>
      %103 = arith.divf %101, %102 : vector<64x1xf32>
      %104 = vector.broadcast %103 : vector<64x1xf32> to vector<64x32xf32>
      %105 = arith.subf %97, %104 : vector<64x32xf32>
      %106 = arith.mulf %105, %105 : vector<64x32xf32>
      %cst_47 = arith.constant dense<0.000000e+00> : vector<64xf32>
      %107 = vector.multi_reduction <add>, %106, %cst_47 [1] : vector<64x32xf32> to vector<64xf32>
      %108 = vector.shape_cast %107 : vector<64xf32> to vector<64x1xf32>
      %cst_48 = arith.constant 3.200000e+01 : f32
      %109 = vector.broadcast %cst_48 : f32 to vector<64x1xf32>
      %110 = arith.divf %108, %109 : vector<64x1xf32>
      %cst_49 = arith.constant 9.99999974E-6 : f32
      %111 = vector.broadcast %cst_49 : f32 to vector<64x1xf32>
      %112 = arith.addf %110, %111 : vector<64x1xf32>
      %113 = math.rsqrt %112 : vector<64x1xf32>
      %114 = vector.broadcast %113 : vector<64x1xf32> to vector<64x32xf32>
      %115 = arith.mulf %105, %114 : vector<64x32xf32>
      %116 = vector.broadcast %98 : vector<1x32xf32> to vector<64x32xf32>
      %117 = arith.mulf %115, %116 : vector<64x32xf32>
      %118 = vector.broadcast %99 : vector<1x32xf32> to vector<64x32xf32>
      %119 = arith.addf %117, %118 : vector<64x32xf32>
      %120 = arith.truncf %119 : vector<64x32xf32> to vector<64x32xbf16>
      %c0_50 = arith.constant 0 : index
      %c0_51 = arith.constant 0 : index
      %121 = vector.load %arg10[%c0_50, %c0_51] : memref<64x32xbf16, #tpu.memory_space<vmem>>, vector<64x32xbf16>
      tpu.vector_store %arg10[%c0_50, %c0_51], %120 {strides = array<i32>} : memref<64x32xbf16, #tpu.memory_space<vmem>>, vector<64x32xbf16>,
      %c0_52 = arith.constant 0 : index
      %c0_53 = arith.constant 0 : index
      %122 = vector.load %arg6[%c0_52, %c0_53] : memref<32x64xbf16, #tpu.memory_space<vmem>>, vector<32x64xbf16>
      %cst_54 = arith.constant dense<0.000000e+00> : vector<64x64xf32>
      %123 = tpu.matmul %120, %122, %cst_54 {dimension_numbers = #tpu.dot_dimension_numbers<[1], [0], [0], [1], [0, 0, 1, 1], [], []>} : vector<64x32xbf16>, vector<32x64xbf16>, vector<64x64xf32> -> vector<64x64xf32>
      %124 = arith.truncf %123 : vector<64x64xf32> to vector<64x64xbf16>
      %c0_55 = arith.constant 0 : index
      %c0_56 = arith.constant 0 : index
      %125 = vector.load %arg11[%c0_55, %c0_56] : memref<64x64xbf16, #tpu.memory_space<vmem>>, vector<64x64xbf16>
      tpu.vector_store %arg11[%c0_55, %c0_56], %124 {strides = array<i32>} : memref<64x64xbf16, #tpu.memory_space<vmem>>, vector<64x64xbf16>,
    } else {
    }
    %c32_i32 = arith.constant 32 : i32
    %3 = arith.muli %arg1, %c32_i32 : i32
    %4 = tpu.assume_multiple %3, 32 : i32
    %c0 = arith.constant 0 : index
    %5 = arith.index_cast %4 : i32 to index
    %c0_1 = arith.constant 0 : index
    %6 = vector.load %arg2[%c0, %5, %c0_1] : memref<1x64x32xf32, #tpu.memory_space<vmem>>, vector<1x32x32xf32>
    %7 = vector.shape_cast %6 : vector<1x32x32xf32> to vector<32x32xf32>
    %8 = arith.index_cast %4 : i32 to index
    %c0_2 = arith.constant 0 : index
    %9 = vector.load %arg10[%8, %c0_2] : memref<64x32xbf16, #tpu.memory_space<vmem>>, vector<32x32xbf16>
    %c0_3 = arith.constant 0 : index
    %c0_4 = arith.constant 0 : index
    %10 = vector.load %arg5[%c0_3, %c0_4] : memref<32x32xbf16, #tpu.memory_space<vmem>>, vector<32x32xbf16>
    %cst = arith.constant dense<0.000000e+00> : vector<32x32xf32>
    %11 = tpu.matmul %9, %10, %cst {dimension_numbers = #tpu.dot_dimension_numbers<[1], [0], [0], [1], [0, 0, 1, 1], [], []>} : vector<32x32xbf16>, vector<32x32xbf16>, vector<32x32xf32> -> vector<32x32xf32>
    %12 = arith.truncf %11 : vector<32x32xf32> to vector<32x32xbf16>
    %c0_5 = arith.constant 0 : index
    %c0_6 = arith.constant 0 : index
    %13 = vector.load %arg11[%c0_5, %c0_6] : memref<64x64xbf16, #tpu.memory_space<vmem>>, vector<64x64xbf16>
    %14 = vector.extract_strided_slice %12 {offsets = [0, 0], sizes = [32, 8], strides = [1, 1]} : vector<32x32xbf16> to vector<32x8xbf16>
    %15 = vector.extract_strided_slice %13 {offsets = [0, 0], sizes = [64, 8], strides = [1, 1]} : vector<64x64xbf16> to vector<64x8xbf16>
    %16 = vector.extract_strided_slice %13 {offsets = [0, 32], sizes = [64, 8], strides = [1, 1]} : vector<64x64xbf16> to vector<64x8xbf16>
    %cst_7 = arith.constant dense<0.000000e+00> : vector<32x64xf32>
    %17 = tpu.matmul %14, %15, %cst_7 {dimension_numbers = #tpu.dot_dimension_numbers<[1], [1], [0], [0], [0, 0, 1, 0], [], []>} : vector<32x8xbf16>, vector<64x8xbf16>, vector<32x64xf32> -> vector<32x64xf32>
    %cst_8 = arith.constant dense<0xFF800000> : vector<32xf32>
    %18 = vector.multi_reduction <maximumf>, %17, %cst_8 [1] : vector<32x64xf32> to vector<32xf32>
    %19 = vector.shape_cast %18 : vector<32xf32> to vector<32x1xf32>
    %20 = vector.broadcast %19 : vector<32x1xf32> to vector<32x64xf32>
    %21 = arith.subf %17, %20 : vector<32x64xf32>
    %22 = math.exp %21 : vector<32x64xf32>
    %cst_9 = arith.constant dense<0.000000e+00> : vector<32xf32>
    %23 = vector.multi_reduction <add>, %22, %cst_9 [1] : vector<32x64xf32> to vector<32xf32>
    %24 = vector.shape_cast %23 : vector<32xf32> to vector<32x1xf32>
    %25 = tpu.reciprocal %24 {approx = true} : vector<32x1xf32> -> vector<32x1xf32>
    %26 = vector.broadcast %25 : vector<32x1xf32> to vector<32x64xf32>
    %27 = arith.mulf %22, %26 : vector<32x64xf32>
    %28 = arith.truncf %27 : vector<32x64xf32> to vector<32x64xbf16>
    %cst_10 = arith.constant dense<0.000000e+00> : vector<32x8xf32>
    %29 = tpu.matmul %28, %16, %cst_10 {dimension_numbers = #tpu.dot_dimension_numbers<[1], [0], [0], [1], [0, 0, 1, 1], [], []>} : vector<32x64xbf16>, vector<64x8xbf16>, vector<32x8xf32> -> vector<32x8xf32>
    %30 = arith.truncf %29 : vector<32x8xf32> to vector<32x8xbf16>
    %c0_11 = arith.constant 0 : index
    %c0_12 = arith.constant 0 : index
    %31 = vector.load %arg12[%c0_11, %c0_12] : memref<32x32xbf16, #tpu.memory_space<vmem>>, vector<32x8xbf16>
    tpu.vector_store %arg12[%c0_11, %c0_12], %30 {strides = array<i32>} : memref<32x32xbf16, #tpu.memory_space<vmem>>, vector<32x8xbf16>,
    %32 = vector.extract_strided_slice %12 {offsets = [0, 8], sizes = [32, 8], strides = [1, 1]} : vector<32x32xbf16> to vector<32x8xbf16>
    %33 = vector.extract_strided_slice %13 {offsets = [0, 8], sizes = [64, 8], strides = [1, 1]} : vector<64x64xbf16> to vector<64x8xbf16>
    %34 = vector.extract_strided_slice %13 {offsets = [0, 40], sizes = [64, 8], strides = [1, 1]} : vector<64x64xbf16> to vector<64x8xbf16>
    %cst_13 = arith.constant dense<0.000000e+00> : vector<32x64xf32>
    %35 = tpu.matmul %32, %33, %cst_13 {dimension_numbers = #tpu.dot_dimension_numbers<[1], [1], [0], [0], [0, 0, 1, 0], [], []>} : vector<32x8xbf16>, vector<64x8xbf16>, vector<32x64xf32> -> vector<32x64xf32>
    %cst_14 = arith.constant dense<0xFF800000> : vector<32xf32>
    %36 = vector.multi_reduction <maximumf>, %35, %cst_14 [1] : vector<32x64xf32> to vector<32xf32>
    %37 = vector.shape_cast %36 : vector<32xf32> to vector<32x1xf32>
    %38 = vector.broadcast %37 : vector<32x1xf32> to vector<32x64xf32>
    %39 = arith.subf %35, %38 : vector<32x64xf32>
    %40 = math.exp %39 : vector<32x64xf32>
    %cst_15 = arith.constant dense<0.000000e+00> : vector<32xf32>
    %41 = vector.multi_reduction <add>, %40, %cst_15 [1] : vector<32x64xf32> to vector<32xf32>
    %42 = vector.shape_cast %41 : vector<32xf32> to vector<32x1xf32>
    %43 = tpu.reciprocal %42 {approx = true} : vector<32x1xf32> -> vector<32x1xf32>
    %44 = vector.broadcast %43 : vector<32x1xf32> to vector<32x64xf32>
    %45 = arith.mulf %40, %44 : vector<32x64xf32>
    %46 = arith.truncf %45 : vector<32x64xf32> to vector<32x64xbf16>
    %cst_16 = arith.constant dense<0.000000e+00> : vector<32x8xf32>
    %47 = tpu.matmul %46, %34, %cst_16 {dimension_numbers = #tpu.dot_dimension_numbers<[1], [0], [0], [1], [0, 0, 1, 1], [], []>} : vector<32x64xbf16>, vector<64x8xbf16>, vector<32x8xf32> -> vector<32x8xf32>
    %48 = arith.truncf %47 : vector<32x8xf32> to vector<32x8xbf16>
    %c0_17 = arith.constant 0 : index
    %c8 = arith.constant 8 : index
    %49 = vector.load %arg12[%c0_17, %c8] : memref<32x32xbf16, #tpu.memory_space<vmem>>, vector<32x8xbf16>
    tpu.vector_store %arg12[%c0_17, %c8], %48 {strides = array<i32>} : memref<32x32xbf16, #tpu.memory_space<vmem>>, vector<32x8xbf16>,
    %50 = vector.extract_strided_slice %12 {offsets = [0, 16], sizes = [32, 8], strides = [1, 1]} : vector<32x32xbf16> to vector<32x8xbf16>
    %51 = vector.extract_strided_slice %13 {offsets = [0, 16], sizes = [64, 8], strides = [1, 1]} : vector<64x64xbf16> to vector<64x8xbf16>
    %52 = vector.extract_strided_slice %13 {offsets = [0, 48], sizes = [64, 8], strides = [1, 1]} : vector<64x64xbf16> to vector<64x8xbf16>
    %cst_18 = arith.constant dense<0.000000e+00> : vector<32x64xf32>
    %53 = tpu.matmul %50, %51, %cst_18 {dimension_numbers = #tpu.dot_dimension_numbers<[1], [1], [0], [0], [0, 0, 1, 0], [], []>} : vector<32x8xbf16>, vector<64x8xbf16>, vector<32x64xf32> -> vector<32x64xf32>
    %cst_19 = arith.constant dense<0xFF800000> : vector<32xf32>
    %54 = vector.multi_reduction <maximumf>, %53, %cst_19 [1] : vector<32x64xf32> to vector<32xf32>
    %55 = vector.shape_cast %54 : vector<32xf32> to vector<32x1xf32>
    %56 = vector.broadcast %55 : vector<32x1xf32> to vector<32x64xf32>
    %57 = arith.subf %53, %56 : vector<32x64xf32>
    %58 = math.exp %57 : vector<32x64xf32>
    %cst_20 = arith.constant dense<0.000000e+00> : vector<32xf32>
    %59 = vector.multi_reduction <add>, %58, %cst_20 [1] : vector<32x64xf32> to vector<32xf32>
    %60 = vector.shape_cast %59 : vector<32xf32> to vector<32x1xf32>
    %61 = tpu.reciprocal %60 {approx = true} : vector<32x1xf32> -> vector<32x1xf32>
    %62 = vector.broadcast %61 : vector<32x1xf32> to vector<32x64xf32>
    %63 = arith.mulf %58, %62 : vector<32x64xf32>
    %64 = arith.truncf %63 : vector<32x64xf32> to vector<32x64xbf16>
    %cst_21 = arith.constant dense<0.000000e+00> : vector<32x8xf32>
    %65 = tpu.matmul %64, %52, %cst_21 {dimension_numbers = #tpu.dot_dimension_numbers<[1], [0], [0], [1], [0, 0, 1, 1], [], []>} : vector<32x64xbf16>, vector<64x8xbf16>, vector<32x8xf32> -> vector<32x8xf32>
    %66 = arith.truncf %65 : vector<32x8xf32> to vector<32x8xbf16>
    %c0_22 = arith.constant 0 : index
    %c16 = arith.constant 16 : index
    %67 = vector.load %arg12[%c0_22, %c16] : memref<32x32xbf16, #tpu.memory_space<vmem>>, vector<32x8xbf16>
    tpu.vector_store %arg12[%c0_22, %c16], %66 {strides = array<i32>} : memref<32x32xbf16, #tpu.memory_space<vmem>>, vector<32x8xbf16>,
    %68 = vector.extract_strided_slice %12 {offsets = [0, 24], sizes = [32, 8], strides = [1, 1]} : vector<32x32xbf16> to vector<32x8xbf16>
    %69 = vector.extract_strided_slice %13 {offsets = [0, 24], sizes = [64, 8], strides = [1, 1]} : vector<64x64xbf16> to vector<64x8xbf16>
    %70 = vector.extract_strided_slice %13 {offsets = [0, 56], sizes = [64, 8], strides = [1, 1]} : vector<64x64xbf16> to vector<64x8xbf16>
    %cst_23 = arith.constant dense<0.000000e+00> : vector<32x64xf32>
    %71 = tpu.matmul %68, %69, %cst_23 {dimension_numbers = #tpu.dot_dimension_numbers<[1], [1], [0], [0], [0, 0, 1, 0], [], []>} : vector<32x8xbf16>, vector<64x8xbf16>, vector<32x64xf32> -> vector<32x64xf32>
    %cst_24 = arith.constant dense<0xFF800000> : vector<32xf32>
    %72 = vector.multi_reduction <maximumf>, %71, %cst_24 [1] : vector<32x64xf32> to vector<32xf32>
    %73 = vector.shape_cast %72 : vector<32xf32> to vector<32x1xf32>
    %74 = vector.broadcast %73 : vector<32x1xf32> to vector<32x64xf32>
    %75 = arith.subf %71, %74 : vector<32x64xf32>
    %76 = math.exp %75 : vector<32x64xf32>
    %cst_25 = arith.constant dense<0.000000e+00> : vector<32xf32>
    %77 = vector.multi_reduction <add>, %76, %cst_25 [1] : vector<32x64xf32> to vector<32xf32>
    %78 = vector.shape_cast %77 : vector<32xf32> to vector<32x1xf32>
    %79 = tpu.reciprocal %78 {approx = true} : vector<32x1xf32> -> vector<32x1xf32>
    %80 = vector.broadcast %79 : vector<32x1xf32> to vector<32x64xf32>
    %81 = arith.mulf %76, %80 : vector<32x64xf32>
    %82 = arith.truncf %81 : vector<32x64xf32> to vector<32x64xbf16>
    %cst_26 = arith.constant dense<0.000000e+00> : vector<32x8xf32>
    %83 = tpu.matmul %82, %70, %cst_26 {dimension_numbers = #tpu.dot_dimension_numbers<[1], [0], [0], [1], [0, 0, 1, 1], [], []>} : vector<32x64xbf16>, vector<64x8xbf16>, vector<32x8xf32> -> vector<32x8xf32>
    %84 = arith.truncf %83 : vector<32x8xf32> to vector<32x8xbf16>
    %c0_27 = arith.constant 0 : index
    %c24 = arith.constant 24 : index
    %85 = vector.load %arg12[%c0_27, %c24] : memref<32x32xbf16, #tpu.memory_space<vmem>>, vector<32x8xbf16>
    tpu.vector_store %arg12[%c0_27, %c24], %84 {strides = array<i32>} : memref<32x32xbf16, #tpu.memory_space<vmem>>, vector<32x8xbf16>,
    %c0_28 = arith.constant 0 : index
    %c0_29 = arith.constant 0 : index
    %86 = vector.load %arg12[%c0_28, %c0_29] : memref<32x32xbf16, #tpu.memory_space<vmem>>, vector<32x32xbf16>
    %c0_30 = arith.constant 0 : index
    %c0_31 = arith.constant 0 : index
    %87 = vector.load %arg7[%c0_30, %c0_31] : memref<32x32xbf16, #tpu.memory_space<vmem>>, vector<32x32xbf16>
    %cst_32 = arith.constant dense<0.000000e+00> : vector<32x32xf32>
    %88 = tpu.matmul %86, %87, %cst_32 {dimension_numbers = #tpu.dot_dimension_numbers<[1], [0], [0], [1], [0, 0, 1, 1], [], []>} : vector<32x32xbf16>, vector<32x32xbf16>, vector<32x32xf32> -> vector<32x32xf32>
    %c0_33 = arith.constant 0 : index
    %c0_34 = arith.constant 0 : index
    %89 = vector.load %arg8[%c0_33, %c0_34] : memref<1x32xf32, #tpu.memory_space<vmem>>, vector<1x32xf32>
    %90 = vector.broadcast %89 : vector<1x32xf32> to vector<32x32xf32>
    %91 = arith.addf %88, %90 : vector<32x32xf32>
    %92 = arith.addf %7, %91 : vector<32x32xf32>
    %c0_35 = arith.constant 0 : index
    %c0_36 = arith.constant 0 : index
    %c0_37 = arith.constant 0 : index
    %93 = vector.load %arg9[%c0_35, %c0_36, %c0_37] : memref<1x32x32xf32, #tpu.memory_space<vmem>>, vector<1x32x32xf32>
    %94 = vector.shape_cast %93 : vector<1x32x32xf32> to vector<32x32xf32>
    %95 = vector.shape_cast %92 : vector<32x32xf32> to vector<1x32x32xf32>
    tpu.vector_store %arg9[%c0_35, %c0_36, %c0_37], %95 {strides = array<i32>} : memref<1x32x32xf32, #tpu.memory_space<vmem>>, vector<1x32x32xf32>,
    return
  }
  func.func @transform_0(%arg0: i32, %arg1: i32) -> (i32, i32, i32) {
    %c0_i32 = arith.constant 0 : i32
    %c0_i32_0 = arith.constant 0 : i32
    %c0_i32_1 = arith.constant 0 : i32
    return %arg0, %c0_i32, %c0_i32_0 : i32, i32, i32
  }
  func.func @transform_1(%arg0: i32, %arg1: i32) -> (i32, i32) {
    %c0_i32 = arith.constant 0 : i32
    %c0_i32_0 = arith.constant 0 : i32
    %c0_i32_1 = arith.constant 0 : i32
    return %c0_i32, %c0_i32_0 : i32, i32
  }
  func.func @transform_2(%arg0: i32, %arg1: i32) -> (i32, i32) {
    %c0_i32 = arith.constant 0 : i32
    %c0_i32_0 = arith.constant 0 : i32
    %c0_i32_1 = arith.constant 0 : i32
    return %c0_i32, %c0_i32_0 : i32, i32
  }
  func.func @transform_3(%arg0: i32, %arg1: i32) -> (i32, i32) {
    %c0_i32 = arith.constant 0 : i32
    %c0_i32_0 = arith.constant 0 : i32
    %c0_i32_1 = arith.constant 0 : i32
    return %c0_i32, %c0_i32_0 : i32, i32
  }
  func.func @transform_4(%arg0: i32, %arg1: i32) -> (i32, i32) {
    %c0_i32 = arith.constant 0 : i32
    %c0_i32_0 = arith.constant 0 : i32
    %c0_i32_1 = arith.constant 0 : i32
    return %c0_i32, %c0_i32_0 : i32, i32
  }
  func.func @transform_5(%arg0: i32, %arg1: i32) -> (i32, i32) {
    %c0_i32 = arith.constant 0 : i32
    %c0_i32_0 = arith.constant 0 : i32
    %c0_i32_1 = arith.constant 0 : i32
    return %c0_i32, %c0_i32_0 : i32, i32
  }
  func.func @transform_6(%arg0: i32, %arg1: i32) -> (i32, i32) {
    %c0_i32 = arith.constant 0 : i32
    %c0_i32_0 = arith.constant 0 : i32
    %c0_i32_1 = arith.constant 0 : i32
    return %c0_i32, %c0_i32_0 : i32, i32
  }
  func.func @transform_7(%arg0: i32, %arg1: i32) -> (i32, i32, i32) {
    %c0_i32 = arith.constant 0 : i32
    %c0_i32_0 = arith.constant 0 : i32
    return %arg0, %arg1, %c0_i32 : i32, i32, i32
  }
}

</mosaic_0001>

<llo_original>
// kernel: tpu_custom_call.1
$region0: #{tpu_custom_call.1}
  #allocation0 [shape = 'u32[]', space=smem, size = 0x4, offset = 0x4, fixed_abs, tag = 'smem constant byte address 0x4 - core index']
  #allocation1 [shape = 'u32[144,128]{1,0:T(1,128)}', space=vmem, size = 0x12000, scoped, tag = 'internal scratch']
  #allocation2 [shape = 'bf16[64,32]{1,0:T(16,128)(2,1)}', space=vmem, size = 0x4000, scoped, tag = 'scratch operand']
  #allocation3 [shape = 'bf16[64,64]{1,0:T(16,128)(2,1)}', space=vmem, size = 0x4000, scoped, tag = 'scratch operand']
  #allocation4 [shape = 'bf16[32,32]{1,0:T(16,128)(2,1)}', space=vmem, size = 0x2000, scoped, tag = 'scratch operand']
  %s0 = inlined_call_operand.hbm [shape: f32[2,64,32], index: 0, kind: input, shape index: {}]
  %s1 = inlined_call_operand.hbm [shape: f32[1,32], index: 1, kind: input, shape index: {}]
  %s2 = inlined_call_operand.hbm [shape: f32[1,32], index: 2, kind: input, shape index: {}]
  %s3 = inlined_call_operand.hbm [shape: bf16[32,32], index: 3, kind: input, shape index: {}]
  %s4 = inlined_call_operand.hbm [shape: bf16[32,64], index: 4, kind: input, shape index: {}]
  %s5 = inlined_call_operand.hbm [shape: bf16[32,32], index: 5, kind: input, shape index: {}]
  %s6 = inlined_call_operand.hbm [shape: f32[1,32], index: 6, kind: input, shape index: {}]
  %s7 = inlined_call_operand.hbm [shape: f32[2,64,32], index: 7, kind: output, shape index: {}]
  %s8 = sld [smem:[#allocation0]]
  $region93: #{tpu_custom_call.1} parent=0
    _
  %s10 = ssub.s32 1, %s8
  %s11 = scalar_select 0, %s10, %s8
  $region1: #{tpu_custom_call.1} parent=0
    #allocation5 [shape = 'u8[65536]{0}', space=vmem, size = 0x10000, scoped, tag = 'input window, operand 0']
    #allocation6 [shape = 's32[2]{0}', space=sflag, size = 0x8, scoped, tag = 'scoped memory for tpu_custom_call.1']
    #allocation7 [shape = 's32[2]{0}', space=sflag, size = 0x8, scoped, tag = 'scoped memory for tpu_custom_call.1']
    #allocation8 [shape = 'u8[512]{0}', space=vmem, size = 0x400, scoped, tag = 'input window, operand 1, single buffered']
    #allocation9 [shape = 's32[1]{0}', space=sflag, size = 0x4, scoped, tag = 'scoped memory for tpu_custom_call.1']
    #allocation10 [shape = 'u8[512]{0}', space=vmem, size = 0x400, scoped, tag = 'input window, operand 2, single buffered']
    #allocation11 [shape = 'u8[8192]{0}', space=vmem, size = 0x2000, scoped, tag = 'input window, operand 3, single buffered']
    #allocation12 [shape = 's32[1]{0}', space=sflag, size = 0x4, scoped, tag = 'scoped memory for tpu_custom_call.1']
    #allocation13 [shape = 'u8[8192]{0}', space=vmem, size = 0x2000, scoped, tag = 'input window, operand 4, single buffered']
    #allocation14 [shape = 'u8[8192]{0}', space=vmem, size = 0x2000, scoped, tag = 'input window, operand 5, single buffered']
    #allocation15 [shape = 's32[1]{0}', space=sflag, size = 0x4, scoped, tag = 'scoped memory for tpu_custom_call.1']
    #allocation16 [shape = 'u8[512]{0}', space=vmem, size = 0x400, scoped, tag = 'input window, operand 6, single buffered']
    #allocation17 [shape = 'u8[32768]{0}', space=vmem, size = 0x8000, scoped, tag = 'output window, operand 0']
    %12 = vsyncpa [#allocation6], 0
    %s13 = scalar_lea.sflag [#allocation6], 1
    %14 = vsyncpa %s13, 0
    %15 = vsyncpa [#allocation9], 0
    %16 = vsyncpa [#allocation12], 0
    %17 = vsyncpa [#allocation15], 0
    %18 = vsyncpa [#allocation7], 0
    %s19 = scalar_lea.sflag [#allocation7], 1
    %20 = vsyncpa %s19, 0
    loop: start=0, step=1, limit=6
    $region2: #{tpu_custom_call.1} parent=1 // loop_pre_header
      _
    $region3: #{tpu_custom_call.1} parent=1 // loop_header
      %s22 = sphi 0, %s26
      %p23 = scmp.ge.s32.totalorder %s22, 6
      %s29 = sphi 0, %s41
      %s30 = sphi 0, %s37
      %s31 = sphi 0, %s29
      %s32 = sphi 0, %s30
      %s33 = sphi 0, %s31
      %s34 = sphi 0, %s32
      %s44 = sphi 0, %s46
      %s47 = sphi 0, %s44
      %s48 = sphi 0, %s47
      %s64 = sphi 0, %s48
      %s68 = sphi 0, %s68
      %s70 = sphi 0, %s68
      %s71 = sphi 0, %s70
      %s85 = sphi 0, %s71
      %s89 = sphi 0, %s89
      %s91 = sphi 0, %s89
      %s92 = sphi 0, %s91
      %s106 = sphi 0, %s92
      %s110 = sphi 0, %s110
      %s112 = sphi 0, %s110
      %s113 = sphi 0, %s112
      %s127 = sphi 0, %s113
      %s131 = sphi 0, %s131
      %s133 = sphi 0, %s131
      %s134 = sphi 0, %s133
      %s148 = sphi 0, %s134
      %s152 = sphi 0, %s152
      %s154 = sphi 0, %s152
      %s155 = sphi 0, %s154
      %s169 = sphi 0, %s155
      %s173 = sphi 0, %s173
      %s175 = sphi 0, %s173
      %s176 = sphi 0, %s175
      %s190 = sphi 0, %s176
      %s198 = sphi 0, %s200
      %s201 = sphi 0, %s198
      %s202 = sphi 0, %s201
      %s218 = sphi 0, %s202
    $region4: #{tpu_custom_call.1} parent=1 // loop_header_branch
      %25 = sbr.rel (%p23) target = $region8
    $region5: #{tpu_custom_call.1} parent=1 // loop_body
      %s27 = ssub.s32 %s22, 1
      %s28 = ssub.s32 %s22, 2
      %s35 = sadd.s32 1, %s30
      %p36 = scmp.ge.s32.totalorder %s35, 2
      %s37 = scalar_select %p36, 0, %s35
      %s38 = sadd.s32 1, %s29
      %s39 = scalar_select %p36, %s38, %s29
      %p40 = scmp.ge.s32.totalorder %s39, 2
      %s41 = scalar_select %p40, 0, %s39
      %s42 = ssub.s32 %s29, %s41
      %p43 = scmp.eq.s32.totalorder %s42, 0
      %s45 = sadd.s32 %s44, 1
      %s46 = scalar_select %p43, %s44, %s45
      %p49 = pneg %p43
      %p50 = scmp.eq.s32.totalorder %s22, 3
      %p51 = por %p49, %p50
      %p52 = scmp.ne.s32.totalorder %s44, %s47
      %p53 = scmp.eq.s32.totalorder %s22, 0
      %p54 = por %p52, %p53
      %p55 = scmp.ne.s32.totalorder %s44, %s47
      %p56 = scmp.eq.s32.totalorder %s27, 3
      %p57 = por %p55, %p56
      %p58 = scmp.ne.s32.totalorder %s47, %s48
      %p59 = scmp.eq.s32.totalorder %s27, 0
      %p60 = por %p58, %p59
      %p61 = scmp.ne.s32.totalorder %s47, %s48
      %p62 = scmp.eq.s32.totalorder %s28, 3
      %p63 = por %p61, %p62
      %p65 = scmp.ne.s32.totalorder %s48, %s64
      %p66 = scmp.eq.s32.totalorder %s28, 0
      %p67 = por %p65, %p66
      %s69 = sadd.s32 %s68, 1
      %p72 = scmp.eq.s32.totalorder %s22, 3
      %p73 = scmp.ne.s32.totalorder %s68, %s70
      %p74 = scmp.eq.s32.totalorder %s22, 0
      %p75 = por %p73, %p74
      %p76 = scmp.ne.s32.totalorder %s68, %s70
      %p77 = scmp.eq.s32.totalorder %s27, 3
      %p78 = por %p76, %p77
      %p79 = scmp.ne.s32.totalorder %s70, %s71
      %p80 = scmp.eq.s32.totalorder %s27, 0
      %p81 = por %p79, %p80
      %p82 = scmp.ne.s32.totalorder %s70, %s71
      %p83 = scmp.eq.s32.totalorder %s28, 3
      %p84 = por %p82, %p83
      %p86 = scmp.ne.s32.totalorder %s71, %s85
      %p87 = scmp.eq.s32.totalorder %s28, 0
      %p88 = por %p86, %p87
      %s90 = sadd.s32 %s89, 1
      %p93 = scmp.eq.s32.totalorder %s22, 3
      %p94 = scmp.ne.s32.totalorder %s89, %s91
      %p95 = scmp.eq.s32.totalorder %s22, 0
      %p96 = por %p94, %p95
      %p97 = scmp.ne.s32.totalorder %s89, %s91
      %p98 = scmp.eq.s32.totalorder %s27, 3
      %p99 = por %p97, %p98
      %p100 = scmp.ne.s32.totalorder %s91, %s92
      %p101 = scmp.eq.s32.totalorder %s27, 0
      %p102 = por %p100, %p101
      %p103 = scmp.ne.s32.totalorder %s91, %s92
      %p104 = scmp.eq.s32.totalorder %s28, 3
      %p105 = por %p103, %p104
      %p107 = scmp.ne.s32.totalorder %s92, %s106
      %p108 = scmp.eq.s32.totalorder %s28, 0
      %p109 = por %p107, %p108
      %s111 = sadd.s32 %s110, 1
      %p114 = scmp.eq.s32.totalorder %s22, 3
      %p115 = scmp.ne.s32.totalorder %s110, %s112
      %p116 = scmp.eq.s32.totalorder %s22, 0
      %p117 = por %p115, %p116
      %p118 = scmp.ne.s32.totalorder %s110, %s112
      %p119 = scmp.eq.s32.totalorder %s27, 3
      %p120 = por %p118, %p119
      %p121 = scmp.ne.s32.totalorder %s112, %s113
      %p122 = scmp.eq.s32.totalorder %s27, 0
      %p123 = por %p121, %p122
      %p124 = scmp.ne.s32.totalorder %s112, %s113
      %p125 = scmp.eq.s32.totalorder %s28, 3
      %p126 = por %p124, %p125
      %p128 = scmp.ne.s32.totalorder %s113, %s127
      %p129 = scmp.eq.s32.totalorder %s28, 0
      %p130 = por %p128, %p129
      %s132 = sadd.s32 %s131, 1
      %p135 = scmp.eq.s32.totalorder %s22, 3
      %p136 = scmp.ne.s32.totalorder %s131, %s133
      %p137 = scmp.eq.s32.totalorder %s22, 0
      %p138 = por %p136, %p137
      %p139 = scmp.ne.s32.totalorder %s131, %s133
      %p140 = scmp.eq.s32.totalorder %s27, 3
      %p141 = por %p139, %p140
      %p142 = scmp.ne.s32.totalorder %s133, %s134
      %p143 = scmp.eq.s32.totalorder %s27, 0
      %p144 = por %p142, %p143
      %p145 = scmp.ne.s32.totalorder %s133, %s134
      %p146 = scmp.eq.s32.totalorder %s28, 3
      %p147 = por %p145, %p146
      %p149 = scmp.ne.s32.totalorder %s134, %s148
      %p150 = scmp.eq.s32.totalorder %s28, 0
      %p151 = por %p149, %p150
      %s153 = sadd.s32 %s152, 1
      %p156 = scmp.eq.s32.totalorder %s22, 3
      %p157 = scmp.ne.s32.totalorder %s152, %s154
      %p158 = scmp.eq.s32.totalorder %s22, 0
      %p159 = por %p157, %p158
      %p160 = scmp.ne.s32.totalorder %s152, %s154
      %p161 = scmp.eq.s32.totalorder %s27, 3
      %p162 = por %p160, %p161
      %p163 = scmp.ne.s32.totalorder %s154, %s155
      %p164 = scmp.eq.s32.totalorder %s27, 0
      %p165 = por %p163, %p164
      %p166 = scmp.ne.s32.totalorder %s154, %s155
      %p167 = scmp.eq.s32.totalorder %s28, 3
      %p168 = por %p166, %p167
      %p170 = scmp.ne.s32.totalorder %s155, %s169
      %p171 = scmp.eq.s32.totalorder %s28, 0
      %p172 = por %p170, %p171
      %s174 = sadd.s32 %s173, 1
      %p177 = scmp.eq.s32.totalorder %s22, 3
      %p178 = scmp.ne.s32.totalorder %s173, %s175
      %p179 = scmp.eq.s32.totalorder %s22, 0
      %p180 = por %p178, %p179
      %p181 = scmp.ne.s32.totalorder %s173, %s175
      %p182 = scmp.eq.s32.totalorder %s27, 3
      %p183 = por %p181, %p182
      %p184 = scmp.ne.s32.totalorder %s175, %s176
      %p185 = scmp.eq.s32.totalorder %s27, 0
      %p186 = por %p184, %p185
      %p187 = scmp.ne.s32.totalorder %s175, %s176
      %p188 = scmp.eq.s32.totalorder %s28, 3
      %p189 = por %p187, %p188
      %p191 = scmp.ne.s32.totalorder %s176, %s190
      %p192 = scmp.eq.s32.totalorder %s28, 0
      %p193 = por %p191, %p192
      %s194 = ssub.s32 %s29, %s41
      %s195 = ssub.s32 %s30, %s37
      %s196 = sor.u32 %s194, %s195
      %p197 = scmp.eq.s32.totalorder %s196, 0
      %s199 = sadd.s32 %s198, 1
      %s200 = scalar_select %p197, %s198, %s199
      %p203 = pneg %p197
      %p204 = scmp.eq.s32.totalorder %s22, 3
      %p205 = por %p203, %p204
      %p206 = scmp.ne.s32.totalorder %s198, %s201
      %p207 = scmp.eq.s32.totalorder %s22, 0
      %p208 = por %p206, %p207
      %p209 = scmp.ne.s32.totalorder %s198, %s201
      %p210 = scmp.eq.s32.totalorder %s27, 3
      %p211 = por %p209, %p210
      %p212 = scmp.ne.s32.totalorder %s201, %s202
      %p213 = scmp.eq.s32.totalorder %s27, 0
      %p214 = por %p212, %p213
      %p215 = scmp.ne.s32.totalorder %s201, %s202
      %p216 = scmp.eq.s32.totalorder %s28, 3
      %p217 = por %p215, %p216
      %p219 = scmp.ne.s32.totalorder %s202, %s218
      %p220 = scmp.eq.s32.totalorder %s28, 0
      %p221 = por %p219, %p220
      %p222 = scmp.le.s32.totalorder 1, %s22
      %p223 = scmp.lt.s32.totalorder %s22, 5
      %p224 = pnand %p222, %p223
      %p225 = pneg %p224
      // Predicated region
      $region9: #{tpu_custom_call.1} parent=5 // pred_check
        _
      $region10: #{tpu_custom_call.1} parent=5 // pred_check_branch
        %227 = sbr.rel (%p224) target = $region12
      $region11: #{tpu_custom_call.1} parent=5 // pred_region
        %s228 = ssub.s32 %s22, 1
        // Predicated region
        $region13: #{tpu_custom_call.1} parent=11 // pred_check
          %p229 = pneg %p81
        $region14: #{tpu_custom_call.1} parent=11 // pred_check_branch
          %231 = sbr.rel (%p229) target = $region16
        $region15: #{tpu_custom_call.1} parent=11 // pred_region
          %s233 = ssub.s32 16, 16
          %234 = vsyncadd [#allocation9], %s233
          %s236 = sshll.u32 [#allocation8], 4
          %s237 = int_to_ptr.vmem [resolvable:$true] %s236
          %239 = dma.hbm_to_vmem [thread:$0]  %s1, 16, %s237, [#allocation9]
        $region16: #{tpu_custom_call.1} parent=11 // pred_fallthru
          _
        // Predicated region
        $region17: #{tpu_custom_call.1} parent=11 // pred_check
          %p240 = pneg %p102
        $region18: #{tpu_custom_call.1} parent=11 // pred_check_branch
          %242 = sbr.rel (%p240) target = $region20
        $region19: #{tpu_custom_call.1} parent=11 // pred_region
          %s244 = ssub.s32 16, 16
          %245 = vsyncadd [#allocation9], %s244
          %s247 = sshll.u32 [#allocation10], 4
          %s248 = int_to_ptr.vmem [resolvable:$true] %s247
          %250 = dma.hbm_to_vmem [thread:$0]  %s2, 16, %s248, [#allocation9]
        $region20: #{tpu_custom_call.1} parent=11 // pred_fallthru
          _
        // Predicated region
        $region21: #{tpu_custom_call.1} parent=11 // pred_check
          %p251 = pneg %p123
        $region22: #{tpu_custom_call.1} parent=11 // pred_check_branch
          %253 = sbr.rel (%p251) target = $region24
        $region23: #{tpu_custom_call.1} parent=11 // pred_region
          %s255 = ssub.s32 256, 256
          %256 = vsyncadd [#allocation12], %s255
          %s257 = sshll.u32 [#allocation11], 4
          %s258 = int_to_ptr.vmem [resolvable:$true] %s257
          %263 = dma.hbm_to_vmem [thread:$0]  %s3, 256, %s258, [#allocation12], 64, 64, 4
        $region24: #{tpu_custom_call.1} parent=11 // pred_fallthru
          _
        // Predicated region
        $region25: #{tpu_custom_call.1} parent=11 // pred_check
          %p264 = pneg %p144
        $region26: #{tpu_custom_call.1} parent=11 // pred_check_branch
          %266 = sbr.rel (%p264) target = $region28
        $region27: #{tpu_custom_call.1} parent=11 // pred_region
          %s268 = ssub.s32 256, 256
          %269 = vsyncadd [#allocation12], %s268
          %s270 = sshll.u32 [#allocation13], 4
          %s271 = int_to_ptr.vmem [resolvable:$true] %s270
          %276 = dma.hbm_to_vmem [thread:$0]  %s4, 256, %s271, [#allocation12], 64, 64, 4
        $region28: #{tpu_custom_call.1} parent=11 // pred_fallthru
          _
        // Predicated region
        $region29: #{tpu_custom_call.1} parent=11 // pred_check
          %p277 = pneg %p165
        $region30: #{tpu_custom_call.1} parent=11 // pred_check_branch
          %279 = sbr.rel (%p277) target = $region32
        $region31: #{tpu_custom_call.1} parent=11 // pred_region
          %s281 = ssub.s32 256, 256
          %282 = vsyncadd [#allocation15], %s281
          %s283 = sshll.u32 [#allocation14], 4
          %s284 = int_to_ptr.vmem [resolvable:$true] %s283
          %289 = dma.hbm_to_vmem [thread:$0]  %s5, 256, %s284, [#allocation15], 64, 64, 4
        $region32: #{tpu_custom_call.1} parent=11 // pred_fallthru
          _
        // Predicated region
        $region33: #{tpu_custom_call.1} parent=11 // pred_check
          %p290 = pneg %p186
        $region34: #{tpu_custom_call.1} parent=11 // pred_check_branch
          %292 = sbr.rel (%p290) target = $region36
        $region35: #{tpu_custom_call.1} parent=11 // pred_region
          %s294 = ssub.s32 16, 16
          %295 = vsyncadd [#allocation15], %s294
          %s297 = sshll.u32 [#allocation16], 4
          %s298 = int_to_ptr.vmem [resolvable:$true] %s297
          %300 = dma.hbm_to_vmem [thread:$0]  %s6, 16, %s298, [#allocation15]
        $region36: #{tpu_custom_call.1} parent=11 // pred_fallthru
          _
      $region12: #{tpu_custom_call.1} parent=5 // pred_fallthru
        _
      %p301 = scmp.lt.s32.totalorder %s22, 4
      // Predicated region
      $region37: #{tpu_custom_call.1} parent=5 // pred_check
        %p302 = pneg %p301
      $region38: #{tpu_custom_call.1} parent=5 // pred_check_branch
        %304 = sbr.rel (%p302) target = $region40
      $region39: #{tpu_custom_call.1} parent=5 // pred_region
        // Predicated region
        $region41: #{tpu_custom_call.1} parent=39 // pred_check
          %p305 = pneg %p54
        $region42: #{tpu_custom_call.1} parent=39 // pred_check_branch
          %307 = sbr.rel (%p305) target = $region44
        $region43: #{tpu_custom_call.1} parent=39 // pred_region
          %s308 = sand.u32 %s44, 1
          %s309 = scalar_lea.sflag [#allocation6], %s308
          %s310 = sand.u32 %s44, 1
          %s311 = smul.addr %s310, 64
          %s312 = scalar_lea.vmem [#allocation5], %s311
          %s314 = ssub.s32 1024, 1024
          %315 = vsyncadd %s309, %s314
          %s316 = smul.addr %s29, 8
          %s317 = smul.addr %s316, 128
          %s318 = scalar_lea.hbm %s0, %s317
          %s319 = sshll.u32 %s312, 4
          %s320 = int_to_ptr.vmem [resolvable:$true] %s319
          %325 = dma.hbm_to_vmem [thread:$0]  %s318, 1024, %s320, %s309, 128, 128, 8
        $region44: #{tpu_custom_call.1} parent=39 // pred_fallthru
          _
      $region40: #{tpu_custom_call.1} parent=5 // pred_fallthru
        _
      %p326 = scmp.le.s32.totalorder 1, %s22
      %p327 = scmp.lt.s32.totalorder %s22, 5
      %p328 = pnand %p326, %p327
      %p329 = pneg %p328
      // Predicated region
      $region45: #{tpu_custom_call.1} parent=5 // pred_check
        _
      $region46: #{tpu_custom_call.1} parent=5 // pred_check_branch
        %331 = sbr.rel (%p328) target = $region48
      $region47: #{tpu_custom_call.1} parent=5 // pred_region
        %s332 = ssub.s32 %s22, 1
        %s333 = sand.u32 %s47, 1
        %s334 = scalar_lea.sflag [#allocation6], %s333
        %s335 = sand.u32 %s47, 1
        %s336 = smul.addr %s335, 64
        %s337 = scalar_lea.vmem [#allocation5], %s336
        // Predicated region
        $region49: #{tpu_custom_call.1} parent=47 // pred_check
          %p338 = pneg %p60
        $region50: #{tpu_custom_call.1} parent=47 // pred_check_branch
          %340 = sbr.rel (%p338) target = $region52
        $region51: #{tpu_custom_call.1} parent=47 // pred_region
          %341 = dma.done %s334, 1024
        $region52: #{tpu_custom_call.1} parent=47 // pred_fallthru
          _
        // Predicated region
        $region53: #{tpu_custom_call.1} parent=47 // pred_check
          %p342 = pneg %p81
        $region54: #{tpu_custom_call.1} parent=47 // pred_check_branch
          %344 = sbr.rel (%p342) target = $region56
        $region55: #{tpu_custom_call.1} parent=47 // pred_region
          %345 = dma.done [#allocation9], 16
        $region56: #{tpu_custom_call.1} parent=47 // pred_fallthru
          _
        // Predicated region
        $region57: #{tpu_custom_call.1} parent=47 // pred_check
          %p346 = pneg %p102
        $region58: #{tpu_custom_call.1} parent=47 // pred_check_branch
          %348 = sbr.rel (%p346) target = $region60
        $region59: #{tpu_custom_call.1} parent=47 // pred_region
          %349 = dma.done [#allocation9], 16
        $region60: #{tpu_custom_call.1} parent=47 // pred_fallthru
          _
        // Predicated region
        $region61: #{tpu_custom_call.1} parent=47 // pred_check
          %p350 = pneg %p123
        $region62: #{tpu_custom_call.1} parent=47 // pred_check_branch
          %352 = sbr.rel (%p350) target = $region64
        $region63: #{tpu_custom_call.1} parent=47 // pred_region
          %353 = dma.done [#allocation12], 256
        $region64: #{tpu_custom_call.1} parent=47 // pred_fallthru
          _
        // Predicated region
        $region65: #{tpu_custom_call.1} parent=47 // pred_check
          %p354 = pneg %p144
        $region66: #{tpu_custom_call.1} parent=47 // pred_check_branch
          %356 = sbr.rel (%p354) target = $region68
        $region67: #{tpu_custom_call.1} parent=47 // pred_region
          %357 = dma.done [#allocation12], 256
        $region68: #{tpu_custom_call.1} parent=47 // pred_fallthru
          _
        // Predicated region
        $region69: #{tpu_custom_call.1} parent=47 // pred_check
          %p358 = pneg %p165
        $region70: #{tpu_custom_call.1} parent=47 // pred_check_branch
          %360 = sbr.rel (%p358) target = $region72
        $region71: #{tpu_custom_call.1} parent=47 // pred_region
          %361 = dma.done [#allocation15], 256
        $region72: #{tpu_custom_call.1} parent=47 // pred_fallthru
          _
        // Predicated region
        $region73: #{tpu_custom_call.1} parent=47 // pred_check
          %p362 = pneg %p186
        $region74: #{tpu_custom_call.1} parent=47 // pred_check_branch
          %364 = sbr.rel (%p362) target = $region76
        $region75: #{tpu_custom_call.1} parent=47 // pred_region
          %365 = dma.done [#allocation15], 16
        $region76: #{tpu_custom_call.1} parent=47 // pred_fallthru
          _
        %s366 = sand.u32 %s47, 1
        %s367 = scalar_lea.sflag [#allocation6], %s366
        %s368 = sand.u32 %s47, 1
        %s369 = smul.addr %s368, 64
        %s370 = scalar_lea.vmem [#allocation5], %s369
        %p371 = pneg %p60
        %p372 = pneg %p57
        %p373 = pneg %p81
        %p374 = pneg %p78
        %p375 = pneg %p102
        %p376 = pneg %p99
        %p377 = pneg %p123
        %p378 = pneg %p120
        %p379 = pneg %p144
        %p380 = pneg %p141
        %p381 = pneg %p165
        %p382 = pneg %p162
        %p383 = pneg %p186
        %p384 = pneg %p183
        %p385 = pneg %p214
        %p386 = pneg %p211
        %s387 = sand.u32 %s201, 1
        %s388 = scalar_lea.sflag [#allocation7], %s387
        %s389 = sand.u32 %s201, 1
        %s390 = smul.addr %s389, 32
        %s391 = scalar_lea.vmem [#allocation17], %s390
        %s392 = smul.u32 4, %s32
        %p394 = scmp.eq.s32.totalorder %s32, 0
        // Predicated region
        $region77: #{tpu_custom_call.1} parent=47 // pred_check
          %p395 = pneg %p394
        $region78: #{tpu_custom_call.1} parent=47 // pred_check_branch
          %397 = sbr.rel (%p395) target = $region80
        $region79: #{tpu_custom_call.1} parent=47 // pred_region
          %v398 = vld [vmem:[%s337] sm:$0xff]
          %v399 = vld [vmem:[%s337 + $0x8] sm:$0xff]
          %v400 = vld [vmem:[%s337 + $0x10] sm:$0xff]
          %v401 = vld [vmem:[%s337 + $0x18] sm:$0xff]
          %v402 = vld [vmem:[%s337 + $0x20] sm:$0xff]
          %v403 = vld [vmem:[%s337 + $0x28] sm:$0xff]
          %v404 = vld [vmem:[%s337 + $0x30] sm:$0xff]
          %v405 = vld [vmem:[%s337 + $0x38] sm:$0xff]
          %v406 = vld [vmem:[#allocation8] sm:$0x1]
          %v407 = vld [vmem:[#allocation10] sm:$0x1]
          %vm408 = vcmask 261120
          %v409 = vsel %vm408, %v398, 0.0
          %410 = vadd.xlane.f32.xlu0 %v409
          %v411 = vpop.xlane.xlu0 %410
          %v412 = vsel %vm408, %v399, 0.0
          %413 = vadd.xlane.f32.xlu0 %v412
          %v414 = vpop.xlane.xlu0 %413
          %v415 = vsel %vm408, %v400, 0.0
          %416 = vadd.xlane.f32.xlu0 %v415
          %v417 = vpop.xlane.xlu0 %416
          %v418 = vsel %vm408, %v401, 0.0
          %419 = vadd.xlane.f32.xlu0 %v418
          %v420 = vpop.xlane.xlu0 %419
          %v421 = vsel %vm408, %v402, 0.0
          %422 = vadd.xlane.f32.xlu0 %v421
          %v423 = vpop.xlane.xlu0 %422
          %v424 = vsel %vm408, %v403, 0.0
          %425 = vadd.xlane.f32.xlu0 %v424
          %v426 = vpop.xlane.xlu0 %425
          %v427 = vsel %vm408, %v404, 0.0
          %428 = vadd.xlane.f32.xlu0 %v427
          %v429 = vpop.xlane.xlu0 %428
          %v430 = vsel %vm408, %v405, 0.0
          %431 = vadd.xlane.f32.xlu0 %v430
          %v432 = vpop.xlane.xlu0 %431
          %v433 = vrcp.pop 32.0
          %v434 = vmul.f32 %v411, %v433
          %v435 = vmul.f32 %v414, %v433
          %v436 = vmul.f32 %v417, %v433
          %v437 = vmul.f32 %v420, %v433
          %v438 = vmul.f32 %v423, %v433
          %v439 = vmul.f32 %v426, %v433
          %v440 = vmul.f32 %v429, %v433
          %v441 = vmul.f32 %v432, %v433
          %v442 = vsub.f32 %v398, %v434
          %v443 = vsub.f32 %v399, %v435
          %v444 = vsub.f32 %v400, %v436
          %v445 = vsub.f32 %v401, %v437
          %v446 = vsub.f32 %v402, %v438
          %v447 = vsub.f32 %v403, %v439
          %v448 = vsub.f32 %v404, %v440
          %v449 = vsub.f32 %v405, %v441
          %v450 = vmul.f32 %v442, %v442
          %v451 = vmul.f32 %v443, %v443
          %v452 = vmul.f32 %v444, %v444
          %v453 = vmul.f32 %v445, %v445
          %v454 = vmul.f32 %v446, %v446
          %v455 = vmul.f32 %v447, %v447
          %v456 = vmul.f32 %v448, %v448
          %v457 = vmul.f32 %v449, %v449
          %v458 = vsel %vm408, %v450, 0.0
          %459 = vadd.xlane.f32.xlu0 %v458
          %v460 = vpop.xlane.xlu0 %459
          %v461 = vsel %vm408, %v451, 0.0
          %462 = vadd.xlane.f32.xlu0 %v461
          %v463 = vpop.xlane.xlu0 %462
          %v464 = vsel %vm408, %v452, 0.0
          %465 = vadd.xlane.f32.xlu0 %v464
          %v466 = vpop.xlane.xlu0 %465
          %v467 = vsel %vm408, %v453, 0.0
          %468 = vadd.xlane.f32.xlu0 %v467
          %v469 = vpop.xlane.xlu0 %468
          %v470 = vsel %vm408, %v454, 0.0
          %471 = vadd.xlane.f32.xlu0 %v470
          %v472 = vpop.xlane.xlu0 %471
          %v473 = vsel %vm408, %v455, 0.0
          %474 = vadd.xlane.f32.xlu0 %v473
          %v475 = vpop.xlane.xlu0 %474
          %v476 = vsel %vm408, %v456, 0.0
          %477 = vadd.xlane.f32.xlu0 %v476
          %v478 = vpop.xlane.xlu0 %477
          %v479 = vsel %vm408, %v457, 0.0
          %480 = vadd.xlane.f32.xlu0 %v479
          %v481 = vpop.xlane.xlu0 %480
          %v482 = vmul.f32 %v460, %v433
          %v483 = vmul.f32 %v463, %v433
          %v484 = vmul.f32 %v466, %v433
          %v485 = vmul.f32 %v469, %v433
          %v486 = vmul.f32 %v472, %v433
          %v487 = vmul.f32 %v475, %v433
          %v488 = vmul.f32 %v478, %v433
          %v489 = vmul.f32 %v481, %v433
          %v490 = vadd.f32 %v482, 1e-05
          %v491 = vadd.f32 %v483, 1e-05
          %v492 = vadd.f32 %v484, 1e-05
          %v493 = vadd.f32 %v485, 1e-05
          %v494 = vadd.f32 %v486, 1e-05
          %v495 = vadd.f32 %v487, 1e-05
          %v496 = vadd.f32 %v488, 1e-05
          %v497 = vadd.f32 %v489, 1e-05
          %v498 = vrsqrt.pop %v490
          %v499 = vrsqrt.pop %v491
          %v500 = vrsqrt.pop %v492
          %v501 = vrsqrt.pop %v493
          %v502 = vrsqrt.pop %v494
          %v503 = vrsqrt.pop %v495
          %v504 = vrsqrt.pop %v496
          %v505 = vrsqrt.pop %v497
          %v506 = vmul.f32 %v442, %v498
          %v507 = vmul.f32 %v443, %v499
          %v508 = vmul.f32 %v444, %v500
          %v509 = vmul.f32 %v445, %v501
          %v510 = vmul.f32 %v446, %v502
          %v511 = vmul.f32 %v447, %v503
          %v512 = vmul.f32 %v448, %v504
          %v513 = vmul.f32 %v449, %v505
          %v515 = vlaneseq
          %v516 = vshrl.u32 %v515, 7
          %v517 = vsub.s32 0, %v516
          %v518 = vrot.slane %v406, %v517
          %v520 = vmul.f32 %v506, %v518
          %v521 = vmul.f32 %v507, %v518
          %v522 = vmul.f32 %v508, %v518
          %v523 = vmul.f32 %v509, %v518
          %v524 = vmul.f32 %v510, %v518
          %v525 = vmul.f32 %v511, %v518
          %v526 = vmul.f32 %v512, %v518
          %v527 = vmul.f32 %v513, %v518
          %v529 = vlaneseq
          %v530 = vshrl.u32 %v529, 7
          %v531 = vsub.s32 0, %v530
          %v532 = vrot.slane %v407, %v531
          %v534 = vadd.f32 %v520, %v532
          %v535 = vadd.f32 %v521, %v532
          %v536 = vadd.f32 %v522, %v532
          %v537 = vadd.f32 %v523, %v532
          %v538 = vadd.f32 %v524, %v532
          %v539 = vadd.f32 %v525, %v532
          %v540 = vadd.f32 %v526, %v532
          %v541 = vadd.f32 %v527, %v532
          %v542 = vpack.c.bf16 %v535, %v534
          %v543 = vpack.c.bf16 %v537, %v536
          %v544 = vpack.c.bf16 %v539, %v538
          %v545 = vpack.c.bf16 %v541, %v540
          %546 = vst.msk [vmem:[#allocation2] sm:$0xff] %vm408, %v542
          %547 = vst.msk [vmem:[#allocation2 + $0x8] sm:$0xff] %vm408, %v543
          %548 = vst.msk [vmem:[#allocation2 + $0x10] sm:$0xff] %vm408, %v544
          %549 = vst.msk [vmem:[#allocation2 + $0x18] sm:$0xff] %vm408, %v545
          %v550 = vld [vmem:[#allocation13] sm:$0xf]
          %v551 = vld [vmem:[#allocation13 + $0x4] sm:$0xf]
          %v552 = vld [vmem:[#allocation13 + $0x8] sm:$0xf]
          %v553 = vld [vmem:[#allocation13 + $0xc] sm:$0xf]
          %v558 = vunpack.c.l.b16 %v550
          %v559 = vunpack.c.l.b16 %v551
          %v560 = vunpack.c.l.b16 %v552
          %v561 = vunpack.c.l.b16 %v553
          %v562 = vpack.c.b16 %v559, %v558
          %v563 = vpack.c.b16 %v561, %v560
          %v567 = vsel %vm408, %v542, 0
          %v570 = vsel %vm408, %v543, 0
          %v573 = vsel %vm408, %v544, 0
          %v576 = vsel %vm408, %v545, 0
          %578 = vmatprep.subr.bf16.mxu0 0
          %579 = vmatpush1.bf16.msra.mxu0 %v562
          %580 = vmatprep.subr.bf16.mxu0 0
          %581 = vmatpush1.bf16.msra.mxu0 %v563
          %582 = vmatprep.subr.bf16.mxu0 0
          %583 = vmatpush1.bf16.msra.mxu0 0
          %584 = vmatprep.subr.bf16.mxu0 0
          %585 = vmatpush1.bf16.msra.mxu0 0
          %586 = vmatprep.subr.bf16.mxu0 0
          %587 = vmatpush1.bf16.msra.mxu0 0
          %588 = vmatprep.subr.bf16.mxu0 0
          %589 = vmatpush1.bf16.msra.mxu0 0
          %590 = vmatprep.subr.bf16.mxu0 0
          %591 = vmatpush1.bf16.msra.mxu0 0
          %592 = vmatprep.subr.bf16.mxu0 0
          %593 = vmatpush1.bf16.msra.mxu0 0
          %594 = vmatprep.subr.bf16.mxu0 0
          %595 = vmatpush1.bf16.msra.mxu0 0
          %596 = vmatprep.subr.bf16.mxu0 0
          %597 = vmatpush1.bf16.msra.mxu0 0
          %598 = vmatprep.subr.bf16.mxu0 0
          %599 = vmatpush1.bf16.msra.mxu0 0
          %600 = vmatprep.subr.bf16.mxu0 0
          %601 = vmatpush1.bf16.msra.mxu0 0
          %602 = vmatprep.subr.bf16.mxu0 0
          %603 = vmatpush1.bf16.msra.mxu0 0
          %604 = vmatprep.subr.bf16.mxu0 0
          %605 = vmatpush1.bf16.msra.mxu0 0
          %606 = vmatprep.subr.bf16.mxu0 0
          %607 = vmatpush1.bf16.msra.mxu0 0
          %608 = vmatprep.subr.bf16.mxu0 0
          %609 = vmatpush1.bf16.msra.mxu0 0
          %610 = vmatprep.mubr.bf16.mxu0 0
          %611 = vmatmul.mubr.bf16.gmra.mrb[0].mxu0 %v567
          %v612 = vpop.f32.mrb[0].mxu0
          %v613 = vadd.f32 0.0, %v612
          %v614 = vpop.f32.mrb[0].mxu0
          %v615 = vpop.f32.mrb[0].mxu0
          %v616 = vadd.f32 0.0, %v615
          %v617 = vpop.f32.mrb[0].mxu0
          %618 = vmatprep.mubr.bf16.mxu0 0
          %619 = vmatmul.mubr.bf16.gmra.mrb[0].mxu0 %v570
          %v620 = vpop.f32.mrb[0].mxu0
          %v621 = vadd.f32 0.0, %v620
          %v622 = vpop.f32.mrb[0].mxu0
          %v623 = vpop.f32.mrb[0].mxu0
          %v624 = vadd.f32 0.0, %v623
          %v625 = vpop.f32.mrb[0].mxu0
          %626 = vmatprep.mubr.bf16.mxu0 0
          %627 = vmatmul.mubr.bf16.gmra.mrb[0].mxu0 %v573
          %v628 = vpop.f32.mrb[0].mxu0
          %v629 = vadd.f32 0.0, %v628
          %v630 = vpop.f32.mrb[0].mxu0
          %v631 = vpop.f32.mrb[0].mxu0
          %v632 = vadd.f32 0.0, %v631
          %v633 = vpop.f32.mrb[0].mxu0
          %634 = vmatprep.mubr.bf16.mxu0 0
          %635 = vmatmul.mubr.bf16.gmra.mrb[0].mxu0 %v576
          %v636 = vpop.f32.mrb[0].mxu0
          %v637 = vadd.f32 0.0, %v636
          %v638 = vpop.f32.mrb[0].mxu0
          %v639 = vpop.f32.mrb[0].mxu0
          %v640 = vadd.f32 0.0, %v639
          %v641 = vpop.f32.mrb[0].mxu0
          %642 = vdwg.mxu0
          %v643 = vpack.c.bf16 %v616, %v613
          %v644 = vpack.c.bf16 %v624, %v621
          %v645 = vpack.c.bf16 %v632, %v629
          %v646 = vpack.c.bf16 %v640, %v637
          %vm647 = vcmask 523264
          %648 = vst.msk [vmem:[#allocation3] sm:$0xff] %vm647, %v643
          %649 = vst.msk [vmem:[#allocation3 + $0x8] sm:$0xff] %vm647, %v644
          %650 = vst.msk [vmem:[#allocation3 + $0x10] sm:$0xff] %vm647, %v645
          %651 = vst.msk [vmem:[#allocation3 + $0x18] sm:$0xff] %vm647, %v646
        $region80: #{tpu_custom_call.1} parent=47 // pred_fallthru
          _
        %s652 = smul.u32 %s32, 32
        %s653 = scalar_lea.vmem %s337, %s652 [#allocation5]
        %v654 = vld [vmem:[%s653] sm:$0xff]
        %v655 = vld [vmem:[%s653 + $0x8] sm:$0xff]
        %v656 = vld [vmem:[%s653 + $0x10] sm:$0xff]
        %v657 = vld [vmem:[%s653 + $0x18] sm:$0xff]
        %s658 = sshra.s32 %s652, 4
        %s659 = sand.u32 %s652, 15
        %s660 = smul.addr %s658, 8
        %s661 = scalar_lea.vmem [#allocation2], %s660
        %v662 = vld [vmem:[%s661] sm:$0xff]
        %v663 = vld [vmem:[%s661 + $0x8] sm:$0xff]
        %v664 = vld [vmem:[#allocation11] sm:$0xf]
        %v665 = vld [vmem:[#allocation11 + $0x4] sm:$0xf]
        %v666 = vld [vmem:[#allocation11 + $0x8] sm:$0xf]
        %v667 = vld [vmem:[#allocation11 + $0xc] sm:$0xf]
        %v672 = vunpack.c.l.b16 %v664
        %v673 = vunpack.c.l.b16 %v665
        %v674 = vunpack.c.l.b16 %v666
        %v675 = vunpack.c.l.b16 %v667
        %v676 = vpack.c.b16 %v673, %v672
        %v677 = vpack.c.b16 %v675, %v674
        %vm680 = vcmask 261120
        %v682 = vsel %vm680, %v662, 0
        %v685 = vsel %vm680, %v663, 0
        %687 = vmatprep.subr.bf16.mxu0 0
        %688 = vmatpush1.bf16.msra.mxu0 %v676
        %689 = vmatprep.subr.bf16.mxu0 0
        %690 = vmatpush1.bf16.msra.mxu0 %v677
        %691 = vmatprep.subr.bf16.mxu0 0
        %692 = vmatpush1.bf16.msra.mxu0 0
        %693 = vmatprep.subr.bf16.mxu0 0
        %694 = vmatpush1.bf16.msra.mxu0 0
        %695 = vmatprep.subr.bf16.mxu0 0
        %696 = vmatpush1.bf16.msra.mxu0 0
        %697 = vmatprep.subr.bf16.mxu0 0
        %698 = vmatpush1.bf16.msra.mxu0 0
        %699 = vmatprep.subr.bf16.mxu0 0
        %700 = vmatpush1.bf16.msra.mxu0 0
        %701 = vmatprep.subr.bf16.mxu0 0
        %702 = vmatpush1.bf16.msra.mxu0 0
        %703 = vmatprep.subr.bf16.mxu0 0
        %704 = vmatpush1.bf16.msra.mxu0 0
        %705 = vmatprep.subr.bf16.mxu0 0
        %706 = vmatpush1.bf16.msra.mxu0 0
        %707 = vmatprep.subr.bf16.mxu0 0
        %708 = vmatpush1.bf16.msra.mxu0 0
        %709 = vmatprep.subr.bf16.mxu0 0
        %710 = vmatpush1.bf16.msra.mxu0 0
        %711 = vmatprep.subr.bf16.mxu0 0
        %712 = vmatpush1.bf16.msra.mxu0 0
        %713 = vmatprep.subr.bf16.mxu0 0
        %714 = vmatpush1.bf16.msra.mxu0 0
        %715 = vmatprep.subr.bf16.mxu0 0
        %716 = vmatpush1.bf16.msra.mxu0 0
        %717 = vmatprep.subr.bf16.mxu0 0
        %718 = vmatpush1.bf16.msra.mxu0 0
        %719 = vmatprep.mubr.bf16.mxu0 0
        %720 = vmatmul.mubr.bf16.gmra.mrb[0].mxu0 %v682
        %v721 = vpop.f32.mrb[0].mxu0
        %v722 = vadd.f32 0.0, %v721
        %v723 = vpop.f32.mrb[0].mxu0
        %v724 = vpop.f32.mrb[0].mxu0
        %v725 = vadd.f32 0.0, %v724
        %v726 = vpop.f32.mrb[0].mxu0
        %727 = vmatprep.mubr.bf16.mxu0 0
        %728 = vmatmul.mubr.bf16.gmra.mrb[0].mxu0 %v685
        %v729 = vpop.f32.mrb[0].mxu0
        %v730 = vadd.f32 0.0, %v729
        %v731 = vpop.f32.mrb[0].mxu0
        %v732 = vpop.f32.mrb[0].mxu0
        %v733 = vadd.f32 0.0, %v732
        %v734 = vpop.f32.mrb[0].mxu0
        %735 = vdwg.mxu0
        %v736 = vpack.c.bf16 %v725, %v722
        %v737 = vpack.c.bf16 %v733, %v730
        %v738 = vld [vmem:[#allocation3] sm:$0xff]
        %v739 = vld [vmem:[#allocation3 + $0x8] sm:$0xff]
        %v740 = vld [vmem:[#allocation3 + $0x10] sm:$0xff]
        %v741 = vld [vmem:[#allocation3 + $0x18] sm:$0xff]
        %vm742 = vcmask 64512
        %v744 = vsel %vm742, %v736, 0
        %v747 = vsel %vm742, %v737, 0
        %v750 = vsel %vm742, %v738, 0
        %v753 = vsel %vm742, %v739, 0
        %v756 = vsel %vm742, %v740, 0
        %v759 = vsel %vm742, %v741, 0
        %761 = vmatprep.subr.bf16.mxu0 0
        %762 = vmatpush1.bf16.xpose.msra.mxu0 %v750
        %763 = vmatprep.subr.bf16.mxu0 0
        %764 = vmatpush1.bf16.xpose.msra.mxu0 %v753
        %765 = vmatprep.subr.bf16.mxu0 0
        %766 = vmatpush1.bf16.xpose.msra.mxu0 %v756
        %767 = vmatprep.subr.bf16.mxu0 0
        %768 = vmatpush1.bf16.xpose.msra.mxu0 %v759
        %769 = vmatprep.subr.bf16.mxu0 0
        %770 = vmatpush1.bf16.xpose.msra.mxu0 0
        %771 = vmatprep.subr.bf16.mxu0 0
        %772 = vmatpush1.bf16.xpose.msra.mxu0 0
        %773 = vmatprep.subr.bf16.mxu0 0
        %774 = vmatpush1.bf16.xpose.msra.mxu0 0
        %775 = vmatprep.subr.bf16.mxu0 0
        %776 = vmatpush1.bf16.xpose.msra.mxu0 0
        %777 = vmatprep.subr.bf16.mxu0 0
        %778 = vmatpush1.bf16.xpose.msra.mxu0 0
        %779 = vmatprep.subr.bf16.mxu0 0
        %780 = vmatpush1.bf16.xpose.msra.mxu0 0
        %781 = vmatprep.subr.bf16.mxu0 0
        %782 = vmatpush1.bf16.xpose.msra.mxu0 0
        %783 = vmatprep.subr.bf16.mxu0 0
        %784 = vmatpush1.bf16.xpose.msra.mxu0 0
        %785 = vmatprep.subr.bf16.mxu0 0
        %786 = vmatpush1.bf16.xpose.msra.mxu0 0
        %787 = vmatprep.subr.bf16.mxu0 0
        %788 = vmatpush1.bf16.xpose.msra.mxu0 0
        %789 = vmatprep.subr.bf16.mxu0 0
        %790 = vmatpush1.bf16.xpose.msra.mxu0 0
        %791 = vmatprep.subr.bf16.mxu0 0
        %792 = vmatpush1.bf16.xpose.msra.mxu0 0
        %793 = vmatprep.mubr.bf16.mxu0 0
        %794 = vmatmul.mubr.bf16.gmra.mrb[0].mxu0 %v744
        %v795 = vpop.f32.mrb[0].mxu0
        %v796 = vadd.f32 0.0, %v795
        %v797 = vpop.f32.mrb[0].mxu0
        %v798 = vpop.f32.mrb[0].mxu0
        %v799 = vadd.f32 0.0, %v798
        %v800 = vpop.f32.mrb[0].mxu0
        %801 = vmatprep.mubr.bf16.mxu0 0
        %802 = vmatmul.mubr.bf16.gmra.mrb[0].mxu0 %v747
        %v803 = vpop.f32.mrb[0].mxu0
        %v804 = vadd.f32 0.0, %v803
        %v805 = vpop.f32.mrb[0].mxu0
        %v806 = vpop.f32.mrb[0].mxu0
        %v807 = vadd.f32 0.0, %v806
        %v808 = vpop.f32.mrb[0].mxu0
        %809 = vdwg.mxu0
        %vm810 = vcmask 523264
        %v811 = vsel %vm810, %v796, -inf
        %812 = vmax.xlane.f32.xlu0 %v811
        %v813 = vpop.xlane.xlu0 %812
        %v814 = vsel %vm810, %v799, -inf
        %815 = vmax.xlane.f32.xlu0 %v814
        %v816 = vpop.xlane.xlu0 %815
        %v817 = vsel %vm810, %v804, -inf
        %818 = vmax.xlane.f32.xlu0 %v817
        %v819 = vpop.xlane.xlu0 %818
        %v820 = vsel %vm810, %v807, -inf
        %821 = vmax.xlane.f32.xlu0 %v820
        %v822 = vpop.xlane.xlu0 %821
        %v823 = vsub.f32 %v796, %v813
        %v824 = vsub.f32 %v799, %v816
        %v825 = vsub.f32 %v804, %v819
        %v826 = vsub.f32 %v807, %v822
        %v827 = vmul.f32 %v823, 1.442695
        %v828 = vpow.pop %v827
        %v829 = vmul.f32 %v824, 1.442695
        %v830 = vpow.pop %v829
        %v831 = vmul.f32 %v825, 1.442695
        %v832 = vpow.pop %v831
        %v833 = vmul.f32 %v826, 1.442695
        %v834 = vpow.pop %v833
        %v835 = vsel %vm810, %v828, 0.0
        %836 = vadd.xlane.f32.xlu0 %v835
        %v837 = vpop.xlane.xlu0 %836
        %v838 = vsel %vm810, %v830, 0.0
        %839 = vadd.xlane.f32.xlu0 %v838
        %v840 = vpop.xlane.xlu0 %839
        %v841 = vsel %vm810, %v832, 0.0
        %842 = vadd.xlane.f32.xlu0 %v841
        %v843 = vpop.xlane.xlu0 %842
        %v844 = vsel %vm810, %v834, 0.0
        %845 = vadd.xlane.f32.xlu0 %v844
        %v846 = vpop.xlane.xlu0 %845
        %v847 = vrcp.pop %v837
        %v848 = vrcp.pop %v840
        %v849 = vrcp.pop %v843
        %v850 = vrcp.pop %v846
        %v851 = vmul.f32 %v828, %v847
        %v852 = vmul.f32 %v830, %v848
        %v853 = vmul.f32 %v832, %v849
        %v854 = vmul.f32 %v834, %v850
        %v855 = vpack.c.bf16 %v852, %v851
        %v856 = vpack.c.bf16 %v854, %v853
        %861 = vrot.lane.b32.xlu0 %v738, 96
        %v862 = vpop.permute.xlu0 %861
        %863 = vrot.lane.b32.xlu0 %v739, 96
        %v864 = vpop.permute.xlu0 %863
        %865 = vrot.lane.b32.xlu0 %v740, 96
        %v866 = vpop.permute.xlu0 %865
        %867 = vrot.lane.b32.xlu0 %v741, 96
        %v868 = vpop.permute.xlu0 %867
        %v874 = vsel %vm810, %v855, 0
        %v877 = vsel %vm810, %v856, 0
        %879 = vmatprep.subr.bf16.mxu0 0
        %880 = vmatpush1.bf16.msra.mxu0 %v862
        %881 = vmatprep.subr.bf16.mxu0 0
        %882 = vmatpush1.bf16.msra.mxu0 %v864
        %883 = vmatprep.subr.bf16.mxu0 0
        %884 = vmatpush1.bf16.msra.mxu0 %v866
        %885 = vmatprep.subr.bf16.mxu0 0
        %886 = vmatpush1.bf16.msra.mxu0 %v868
        %887 = vmatprep.subr.bf16.mxu0 0
        %888 = vmatpush1.bf16.msra.mxu0 0
        %889 = vmatprep.subr.bf16.mxu0 0
        %890 = vmatpush1.bf16.msra.mxu0 0
        %891 = vmatprep.subr.bf16.mxu0 0
        %892 = vmatpush1.bf16.msra.mxu0 0
        %893 = vmatprep.subr.bf16.mxu0 0
        %894 = vmatpush1.bf16.msra.mxu0 0
        %895 = vmatprep.subr.bf16.mxu0 0
        %896 = vmatpush1.bf16.msra.mxu0 0
        %897 = vmatprep.subr.bf16.mxu0 0
        %898 = vmatpush1.bf16.msra.mxu0 0
        %899 = vmatprep.subr.bf16.mxu0 0
        %900 = vmatpush1.bf16.msra.mxu0 0
        %901 = vmatprep.subr.bf16.mxu0 0
        %902 = vmatpush1.bf16.msra.mxu0 0
        %903 = vmatprep.subr.bf16.mxu0 0
        %904 = vmatpush1.bf16.msra.mxu0 0
        %905 = vmatprep.subr.bf16.mxu0 0
        %906 = vmatpush1.bf16.msra.mxu0 0
        %907 = vmatprep.subr.bf16.mxu0 0
        %908 = vmatpush1.bf16.msra.mxu0 0
        %909 = vmatprep.subr.bf16.mxu0 0
        %910 = vmatpush1.bf16.msra.mxu0 0
        %911 = vmatprep.mubr.bf16.mxu0 0
        %912 = vmatmul.mubr.bf16.gmra.mrb[0].mxu0 %v874
        %v913 = vpop.f32.mrb[0].mxu0
        %v914 = vadd.f32 0.0, %v913
        %v915 = vpop.f32.mrb[0].mxu0
        %v916 = vpop.f32.mrb[0].mxu0
        %v917 = vadd.f32 0.0, %v916
        %v918 = vpop.f32.mrb[0].mxu0
        %919 = vmatprep.mubr.bf16.mxu0 0
        %920 = vmatmul.mubr.bf16.gmra.mrb[0].mxu0 %v877
        %v921 = vpop.f32.mrb[0].mxu0
        %v922 = vadd.f32 0.0, %v921
        %v923 = vpop.f32.mrb[0].mxu0
        %v924 = vpop.f32.mrb[0].mxu0
        %v925 = vadd.f32 0.0, %v924
        %v926 = vpop.f32.mrb[0].mxu0
        %927 = vdwg.mxu0
        %v928 = vpack.c.bf16 %v917, %v914
        %v929 = vpack.c.bf16 %v925, %v922
        %930 = vst.msk [vmem:[#allocation4] sm:$0xff] %vm742, %v928
        %931 = vst.msk [vmem:[#allocation4 + $0x8] sm:$0xff] %vm742, %v929
        %934 = vrot.lane.b32.xlu0 %v736, 120
        %v935 = vpop.permute.xlu0 %934
        %936 = vrot.lane.b32.xlu0 %v737, 120
        %v937 = vpop.permute.xlu0 %936
        %938 = vrot.lane.b32.xlu0 %v738, 120
        %v939 = vpop.permute.xlu0 %938
        %940 = vrot.lane.b32.xlu0 %v739, 120
        %v941 = vpop.permute.xlu0 %940
        %942 = vrot.lane.b32.xlu0 %v740, 120
        %v943 = vpop.permute.xlu0 %942
        %944 = vrot.lane.b32.xlu0 %v741, 120
        %v945 = vpop.permute.xlu0 %944
        %v947 = vsel %vm742, %v935, 0
        %v950 = vsel %vm742, %v937, 0
        %v953 = vsel %vm742, %v939, 0
        %v956 = vsel %vm742, %v941, 0
        %v959 = vsel %vm742, %v943, 0
        %v962 = vsel %vm742, %v945, 0
        %964 = vmatprep.subr.bf16.mxu0 0
        %965 = vmatpush1.bf16.xpose.msra.mxu0 %v953
        %966 = vmatprep.subr.bf16.mxu0 0
        %967 = vmatpush1.bf16.xpose.msra.mxu0 %v956
        %968 = vmatprep.subr.bf16.mxu0 0
        %969 = vmatpush1.bf16.xpose.msra.mxu0 %v959
        %970 = vmatprep.subr.bf16.mxu0 0
        %971 = vmatpush1.bf16.xpose.msra.mxu0 %v962
        %972 = vmatprep.subr.bf16.mxu0 0
        %973 = vmatpush1.bf16.xpose.msra.mxu0 0
        %974 = vmatprep.subr.bf16.mxu0 0
        %975 = vmatpush1.bf16.xpose.msra.mxu0 0
        %976 = vmatprep.subr.bf16.mxu0 0
        %977 = vmatpush1.bf16.xpose.msra.mxu0 0
        %978 = vmatprep.subr.bf16.mxu0 0
        %979 = vmatpush1.bf16.xpose.msra.mxu0 0
        %980 = vmatprep.subr.bf16.mxu0 0
        %981 = vmatpush1.bf16.xpose.msra.mxu0 0
        %982 = vmatprep.subr.bf16.mxu0 0
        %983 = vmatpush1.bf16.xpose.msra.mxu0 0
        %984 = vmatprep.subr.bf16.mxu0 0
        %985 = vmatpush1.bf16.xpose.msra.mxu0 0
        %986 = vmatprep.subr.bf16.mxu0 0
        %987 = vmatpush1.bf16.xpose.msra.mxu0 0
        %988 = vmatprep.subr.bf16.mxu0 0
        %989 = vmatpush1.bf16.xpose.msra.mxu0 0
        %990 = vmatprep.subr.bf16.mxu0 0
        %991 = vmatpush1.bf16.xpose.msra.mxu0 0
        %992 = vmatprep.subr.bf16.mxu0 0
        %993 = vmatpush1.bf16.xpose.msra.mxu0 0
        %994 = vmatprep.subr.bf16.mxu0 0
        %995 = vmatpush1.bf16.xpose.msra.mxu0 0
        %996 = vmatprep.mubr.bf16.mxu0 0
        %997 = vmatmul.mubr.bf16.gmra.mrb[0].mxu0 %v947
        %v998 = vpop.f32.mrb[0].mxu0
        %v999 = vadd.f32 0.0, %v998
        %v1000 = vpop.f32.mrb[0].mxu0
        %v1001 = vpop.f32.mrb[0].mxu0
        %v1002 = vadd.f32 0.0, %v1001
        %v1003 = vpop.f32.mrb[0].mxu0
        %1004 = vmatprep.mubr.bf16.mxu0 0
        %1005 = vmatmul.mubr.bf16.gmra.mrb[0].mxu0 %v950
        %v1006 = vpop.f32.mrb[0].mxu0
        %v1007 = vadd.f32 0.0, %v1006
        %v1008 = vpop.f32.mrb[0].mxu0
        %v1009 = vpop.f32.mrb[0].mxu0
        %v1010 = vadd.f32 0.0, %v1009
        %v1011 = vpop.f32.mrb[0].mxu0
        %1012 = vdwg.mxu0
        %v1013 = vsel %vm810, %v999, -inf
        %1014 = vmax.xlane.f32.xlu0 %v1013
        %v1015 = vpop.xlane.xlu0 %1014
        %v1016 = vsel %vm810, %v1002, -inf
        %1017 = vmax.xlane.f32.xlu0 %v1016
        %v1018 = vpop.xlane.xlu0 %1017
        %v1019 = vsel %vm810, %v1007, -inf
        %1020 = vmax.xlane.f32.xlu0 %v1019
        %v1021 = vpop.xlane.xlu0 %1020
        %v1022 = vsel %vm810, %v1010, -inf
        %1023 = vmax.xlane.f32.xlu0 %v1022
        %v1024 = vpop.xlane.xlu0 %1023
        %v1025 = vsub.f32 %v999, %v1015
        %v1026 = vsub.f32 %v1002, %v1018
        %v1027 = vsub.f32 %v1007, %v1021
        %v1028 = vsub.f32 %v1010, %v1024
        %v1029 = vmul.f32 %v1025, 1.442695
        %v1030 = vpow.pop %v1029
        %v1031 = vmul.f32 %v1026, 1.442695
        %v1032 = vpow.pop %v1031
        %v1033 = vmul.f32 %v1027, 1.442695
        %v1034 = vpow.pop %v1033
        %v1035 = vmul.f32 %v1028, 1.442695
        %v1036 = vpow.pop %v1035
        %v1037 = vsel %vm810, %v1030, 0.0
        %1038 = vadd.xlane.f32.xlu0 %v1037
        %v1039 = vpop.xlane.xlu0 %1038
        %v1040 = vsel %vm810, %v1032, 0.0
        %1041 = vadd.xlane.f32.xlu0 %v1040
        %v1042 = vpop.xlane.xlu0 %1041
        %v1043 = vsel %vm810, %v1034, 0.0
        %1044 = vadd.xlane.f32.xlu0 %v1043
        %v1045 = vpop.xlane.xlu0 %1044
        %v1046 = vsel %vm810, %v1036, 0.0
        %1047 = vadd.xlane.f32.xlu0 %v1046
        %v1048 = vpop.xlane.xlu0 %1047
        %v1049 = vrcp.pop %v1039
        %v1050 = vrcp.pop %v1042
        %v1051 = vrcp.pop %v1045
        %v1052 = vrcp.pop %v1048
        %v1053 = vmul.f32 %v1030, %v1049
        %v1054 = vmul.f32 %v1032, %v1050
        %v1055 = vmul.f32 %v1034, %v1051
        %v1056 = vmul.f32 %v1036, %v1052
        %v1057 = vpack.c.bf16 %v1054, %v1053
        %v1058 = vpack.c.bf16 %v1056, %v1055
        %1059 = vrot.lane.b32.xlu0 %v738, 88
        %v1060 = vpop.permute.xlu0 %1059
        %1061 = vrot.lane.b32.xlu0 %v739, 88
        %v1062 = vpop.permute.xlu0 %1061
        %1063 = vrot.lane.b32.xlu0 %v740, 88
        %v1064 = vpop.permute.xlu0 %1063
        %1065 = vrot.lane.b32.xlu0 %v741, 88
        %v1066 = vpop.permute.xlu0 %1065
        %v1072 = vsel %vm810, %v1057, 0
        %v1075 = vsel %vm810, %v1058, 0
        %1077 = vmatprep.subr.bf16.mxu0 0
        %1078 = vmatpush1.bf16.msra.mxu0 %v1060
        %1079 = vmatprep.subr.bf16.mxu0 0
        %1080 = vmatpush1.bf16.msra.mxu0 %v1062
        %1081 = vmatprep.subr.bf16.mxu0 0
        %1082 = vmatpush1.bf16.msra.mxu0 %v1064
        %1083 = vmatprep.subr.bf16.mxu0 0
        %1084 = vmatpush1.bf16.msra.mxu0 %v1066
        %1085 = vmatprep.subr.bf16.mxu0 0
        %1086 = vmatpush1.bf16.msra.mxu0 0
        %1087 = vmatprep.subr.bf16.mxu0 0
        %1088 = vmatpush1.bf16.msra.mxu0 0
        %1089 = vmatprep.subr.bf16.mxu0 0
        %1090 = vmatpush1.bf16.msra.mxu0 0
        %1091 = vmatprep.subr.bf16.mxu0 0
        %1092 = vmatpush1.bf16.msra.mxu0 0
        %1093 = vmatprep.subr.bf16.mxu0 0
        %1094 = vmatpush1.bf16.msra.mxu0 0
        %1095 = vmatprep.subr.bf16.mxu0 0
        %1096 = vmatpush1.bf16.msra.mxu0 0
        %1097 = vmatprep.subr.bf16.mxu0 0
        %1098 = vmatpush1.bf16.msra.mxu0 0
        %1099 = vmatprep.subr.bf16.mxu0 0
        %1100 = vmatpush1.bf16.msra.mxu0 0
        %1101 = vmatprep.subr.bf16.mxu0 0
        %1102 = vmatpush1.bf16.msra.mxu0 0
        %1103 = vmatprep.subr.bf16.mxu0 0
        %1104 = vmatpush1.bf16.msra.mxu0 0
        %1105 = vmatprep.subr.bf16.mxu0 0
        %1106 = vmatpush1.bf16.msra.mxu0 0
        %1107 = vmatprep.subr.bf16.mxu0 0
        %1108 = vmatpush1.bf16.msra.mxu0 0
        %1109 = vmatprep.mubr.bf16.mxu0 0
        %1110 = vmatmul.mubr.bf16.gmra.mrb[0].mxu0 %v1072
        %v1111 = vpop.f32.mrb[0].mxu0
        %v1112 = vadd.f32 0.0, %v1111
        %v1113 = vpop.f32.mrb[0].mxu0
        %v1114 = vpop.f32.mrb[0].mxu0
        %v1115 = vadd.f32 0.0, %v1114
        %v1116 = vpop.f32.mrb[0].mxu0
        %1117 = vmatprep.mubr.bf16.mxu0 0
        %1118 = vmatmul.mubr.bf16.gmra.mrb[0].mxu0 %v1075
        %v1119 = vpop.f32.mrb[0].mxu0
        %v1120 = vadd.f32 0.0, %v1119
        %v1121 = vpop.f32.mrb[0].mxu0
        %v1122 = vpop.f32.mrb[0].mxu0
        %v1123 = vadd.f32 0.0, %v1122
        %v1124 = vpop.f32.mrb[0].mxu0
        %1125 = vdwg.mxu0
        %v1126 = vpack.c.bf16 %v1115, %v1112
        %v1127 = vpack.c.bf16 %v1123, %v1120
        %1130 = vrot.lane.b32.xlu0 %v1126, 8
        %v1131 = vpop.permute.xlu0 %1130
        %1132 = vrot.lane.b32.xlu0 %v1127, 8
        %v1133 = vpop.permute.xlu0 %1132
        %vm1136 = vcmask 130112
        %1137 = vst.msk [vmem:[#allocation4] sm:$0xff] %vm1136, %v1131
        %1138 = vst.msk [vmem:[#allocation4 + $0x8] sm:$0xff] %vm1136, %v1133
        %1139 = vrot.lane.b32.xlu0 %v736, 112
        %v1140 = vpop.permute.xlu0 %1139
        %1141 = vrot.lane.b32.xlu0 %v737, 112
        %v1142 = vpop.permute.xlu0 %1141
        %1143 = vrot.lane.b32.xlu0 %v738, 112
        %v1144 = vpop.permute.xlu0 %1143
        %1145 = vrot.lane.b32.xlu0 %v739, 112
        %v1146 = vpop.permute.xlu0 %1145
        %1147 = vrot.lane.b32.xlu0 %v740, 112
        %v1148 = vpop.permute.xlu0 %1147
        %1149 = vrot.lane.b32.xlu0 %v741, 112
        %v1150 = vpop.permute.xlu0 %1149
        %v1152 = vsel %vm742, %v1140, 0
        %v1155 = vsel %vm742, %v1142, 0
        %v1158 = vsel %vm742, %v1144, 0
        %v1161 = vsel %vm742, %v1146, 0
        %v1164 = vsel %vm742, %v1148, 0
        %v1167 = vsel %vm742, %v1150, 0
        %1169 = vmatprep.subr.bf16.mxu0 0
        %1170 = vmatpush1.bf16.xpose.msra.mxu0 %v1158
        %1171 = vmatprep.subr.bf16.mxu0 0
        %1172 = vmatpush1.bf16.xpose.msra.mxu0 %v1161
        %1173 = vmatprep.subr.bf16.mxu0 0
        %1174 = vmatpush1.bf16.xpose.msra.mxu0 %v1164
        %1175 = vmatprep.subr.bf16.mxu0 0
        %1176 = vmatpush1.bf16.xpose.msra.mxu0 %v1167
        %1177 = vmatprep.subr.bf16.mxu0 0
        %1178 = vmatpush1.bf16.xpose.msra.mxu0 0
        %1179 = vmatprep.subr.bf16.mxu0 0
        %1180 = vmatpush1.bf16.xpose.msra.mxu0 0
        %1181 = vmatprep.subr.bf16.mxu0 0
        %1182 = vmatpush1.bf16.xpose.msra.mxu0 0
        %1183 = vmatprep.subr.bf16.mxu0 0
        %1184 = vmatpush1.bf16.xpose.msra.mxu0 0
        %1185 = vmatprep.subr.bf16.mxu0 0
        %1186 = vmatpush1.bf16.xpose.msra.mxu0 0
        %1187 = vmatprep.subr.bf16.mxu0 0
        %1188 = vmatpush1.bf16.xpose.msra.mxu0 0
        %1189 = vmatprep.subr.bf16.mxu0 0
        %1190 = vmatpush1.bf16.xpose.msra.mxu0 0
        %1191 = vmatprep.subr.bf16.mxu0 0
        %1192 = vmatpush1.bf16.xpose.msra.mxu0 0
        %1193 = vmatprep.subr.bf16.mxu0 0
        %1194 = vmatpush1.bf16.xpose.msra.mxu0 0
        %1195 = vmatprep.subr.bf16.mxu0 0
        %1196 = vmatpush1.bf16.xpose.msra.mxu0 0
        %1197 = vmatprep.subr.bf16.mxu0 0
        %1198 = vmatpush1.bf16.xpose.msra.mxu0 0
        %1199 = vmatprep.subr.bf16.mxu0 0
        %1200 = vmatpush1.bf16.xpose.msra.mxu0 0
        %1201 = vmatprep.mubr.bf16.mxu0 0
        %1202 = vmatmul.mubr.bf16.gmra.mrb[0].mxu0 %v1152
        %v1203 = vpop.f32.mrb[0].mxu0
        %v1204 = vadd.f32 0.0, %v1203
        %v1205 = vpop.f32.mrb[0].mxu0
        %v1206 = vpop.f32.mrb[0].mxu0
        %v1207 = vadd.f32 0.0, %v1206
        %v1208 = vpop.f32.mrb[0].mxu0
        %1209 = vmatprep.mubr.bf16.mxu0 0
        %1210 = vmatmul.mubr.bf16.gmra.mrb[0].mxu0 %v1155
        %v1211 = vpop.f32.mrb[0].mxu0
        %v1212 = vadd.f32 0.0, %v1211
        %v1213 = vpop.f32.mrb[0].mxu0
        %v1214 = vpop.f32.mrb[0].mxu0
        %v1215 = vadd.f32 0.0, %v1214
        %v1216 = vpop.f32.mrb[0].mxu0
        %1217 = vdwg.mxu0
        %v1218 = vsel %vm810, %v1204, -inf
        %1219 = vmax.xlane.f32.xlu0 %v1218
        %v1220 = vpop.xlane.xlu0 %1219
        %v1221 = vsel %vm810, %v1207, -inf
        %1222 = vmax.xlane.f32.xlu0 %v1221
        %v1223 = vpop.xlane.xlu0 %1222
        %v1224 = vsel %vm810, %v1212, -inf
        %1225 = vmax.xlane.f32.xlu0 %v1224
        %v1226 = vpop.xlane.xlu0 %1225
        %v1227 = vsel %vm810, %v1215, -inf
        %1228 = vmax.xlane.f32.xlu0 %v1227
        %v1229 = vpop.xlane.xlu0 %1228
        %v1230 = vsub.f32 %v1204, %v1220
        %v1231 = vsub.f32 %v1207, %v1223
        %v1232 = vsub.f32 %v1212, %v1226
        %v1233 = vsub.f32 %v1215, %v1229
        %v1234 = vmul.f32 %v1230, 1.442695
        %v1235 = vpow.pop %v1234
        %v1236 = vmul.f32 %v1231, 1.442695
        %v1237 = vpow.pop %v1236
        %v1238 = vmul.f32 %v1232, 1.442695
        %v1239 = vpow.pop %v1238
        %v1240 = vmul.f32 %v1233, 1.442695
        %v1241 = vpow.pop %v1240
        %v1242 = vsel %vm810, %v1235, 0.0
        %1243 = vadd.xlane.f32.xlu0 %v1242
        %v1244 = vpop.xlane.xlu0 %1243
        %v1245 = vsel %vm810, %v1237, 0.0
        %1246 = vadd.xlane.f32.xlu0 %v1245
        %v1247 = vpop.xlane.xlu0 %1246
        %v1248 = vsel %vm810, %v1239, 0.0
        %1249 = vadd.xlane.f32.xlu0 %v1248
        %v1250 = vpop.xlane.xlu0 %1249
        %v1251 = vsel %vm810, %v1241, 0.0
        %1252 = vadd.xlane.f32.xlu0 %v1251
        %v1253 = vpop.xlane.xlu0 %1252
        %v1254 = vrcp.pop %v1244
        %v1255 = vrcp.pop %v1247
        %v1256 = vrcp.pop %v1250
        %v1257 = vrcp.pop %v1253
        %v1258 = vmul.f32 %v1235, %v1254
        %v1259 = vmul.f32 %v1237, %v1255
        %v1260 = vmul.f32 %v1239, %v1256
        %v1261 = vmul.f32 %v1241, %v1257
        %v1262 = vpack.c.bf16 %v1259, %v1258
        %v1263 = vpack.c.bf16 %v1261, %v1260
        %1264 = vrot.lane.b32.xlu0 %v738, 80
        %v1265 = vpop.permute.xlu0 %1264
        %1266 = vrot.lane.b32.xlu0 %v739, 80
        %v1267 = vpop.permute.xlu0 %1266
        %1268 = vrot.lane.b32.xlu0 %v740, 80
        %v1269 = vpop.permute.xlu0 %1268
        %1270 = vrot.lane.b32.xlu0 %v741, 80
        %v1271 = vpop.permute.xlu0 %1270
        %v1277 = vsel %vm810, %v1262, 0
        %v1280 = vsel %vm810, %v1263, 0
        %1282 = vmatprep.subr.bf16.mxu0 0
        %1283 = vmatpush1.bf16.msra.mxu0 %v1265
        %1284 = vmatprep.subr.bf16.mxu0 0
        %1285 = vmatpush1.bf16.msra.mxu0 %v1267
        %1286 = vmatprep.subr.bf16.mxu0 0
        %1287 = vmatpush1.bf16.msra.mxu0 %v1269
        %1288 = vmatprep.subr.bf16.mxu0 0
        %1289 = vmatpush1.bf16.msra.mxu0 %v1271
        %1290 = vmatprep.subr.bf16.mxu0 0
        %1291 = vmatpush1.bf16.msra.mxu0 0
        %1292 = vmatprep.subr.bf16.mxu0 0
        %1293 = vmatpush1.bf16.msra.mxu0 0
        %1294 = vmatprep.subr.bf16.mxu0 0
        %1295 = vmatpush1.bf16.msra.mxu0 0
        %1296 = vmatprep.subr.bf16.mxu0 0
        %1297 = vmatpush1.bf16.msra.mxu0 0
        %1298 = vmatprep.subr.bf16.mxu0 0
        %1299 = vmatpush1.bf16.msra.mxu0 0
        %1300 = vmatprep.subr.bf16.mxu0 0
        %1301 = vmatpush1.bf16.msra.mxu0 0
        %1302 = vmatprep.subr.bf16.mxu0 0
        %1303 = vmatpush1.bf16.msra.mxu0 0
        %1304 = vmatprep.subr.bf16.mxu0 0
        %1305 = vmatpush1.bf16.msra.mxu0 0
        %1306 = vmatprep.subr.bf16.mxu0 0
        %1307 = vmatpush1.bf16.msra.mxu0 0
        %1308 = vmatprep.subr.bf16.mxu0 0
        %1309 = vmatpush1.bf16.msra.mxu0 0
        %1310 = vmatprep.subr.bf16.mxu0 0
        %1311 = vmatpush1.bf16.msra.mxu0 0
        %1312 = vmatprep.subr.bf16.mxu0 0
        %1313 = vmatpush1.bf16.msra.mxu0 0
        %1314 = vmatprep.mubr.bf16.mxu0 0
        %1315 = vmatmul.mubr.bf16.gmra.mrb[0].mxu0 %v1277
        %v1316 = vpop.f32.mrb[0].mxu0
        %v1317 = vadd.f32 0.0, %v1316
        %v1318 = vpop.f32.mrb[0].mxu0
        %v1319 = vpop.f32.mrb[0].mxu0
        %v1320 = vadd.f32 0.0, %v1319
        %v1321 = vpop.f32.mrb[0].mxu0
        %1322 = vmatprep.mubr.bf16.mxu0 0
        %1323 = vmatmul.mubr.bf16.gmra.mrb[0].mxu0 %v1280
        %v1324 = vpop.f32.mrb[0].mxu0
        %v1325 = vadd.f32 0.0, %v1324
        %v1326 = vpop.f32.mrb[0].mxu0
        %v1327 = vpop.f32.mrb[0].mxu0
        %v1328 = vadd.f32 0.0, %v1327
        %v1329 = vpop.f32.mrb[0].mxu0
        %1330 = vdwg.mxu0
        %v1331 = vpack.c.bf16 %v1320, %v1317
        %v1332 = vpack.c.bf16 %v1328, %v1325
        %1335 = vrot.lane.b32.xlu0 %v1331, 16
        %v1336 = vpop.permute.xlu0 %1335
        %1337 = vrot.lane.b32.xlu0 %v1332, 16
        %v1338 = vpop.permute.xlu0 %1337
        %vm1341 = vcmask 195712
        %1342 = vst.msk [vmem:[#allocation4] sm:$0xff] %vm1341, %v1336
        %1343 = vst.msk [vmem:[#allocation4 + $0x8] sm:$0xff] %vm1341, %v1338
        %1344 = vrot.lane.b32.xlu0 %v736, 104
        %v1345 = vpop.permute.xlu0 %1344
        %1346 = vrot.lane.b32.xlu0 %v737, 104
        %v1347 = vpop.permute.xlu0 %1346
        %1348 = vrot.lane.b32.xlu0 %v738, 104
        %v1349 = vpop.permute.xlu0 %1348
        %1350 = vrot.lane.b32.xlu0 %v739, 104
        %v1351 = vpop.permute.xlu0 %1350
        %1352 = vrot.lane.b32.xlu0 %v740, 104
        %v1353 = vpop.permute.xlu0 %1352
        %1354 = vrot.lane.b32.xlu0 %v741, 104
        %v1355 = vpop.permute.xlu0 %1354
        %v1357 = vsel %vm742, %v1345, 0
        %v1360 = vsel %vm742, %v1347, 0
        %v1363 = vsel %vm742, %v1349, 0
        %v1366 = vsel %vm742, %v1351, 0
        %v1369 = vsel %vm742, %v1353, 0
        %v1372 = vsel %vm742, %v1355, 0
        %1374 = vmatprep.subr.bf16.mxu0 0
        %1375 = vmatpush1.bf16.xpose.msra.mxu0 %v1363
        %1376 = vmatprep.subr.bf16.mxu0 0
        %1377 = vmatpush1.bf16.xpose.msra.mxu0 %v1366
        %1378 = vmatprep.subr.bf16.mxu0 0
        %1379 = vmatpush1.bf16.xpose.msra.mxu0 %v1369
        %1380 = vmatprep.subr.bf16.mxu0 0
        %1381 = vmatpush1.bf16.xpose.msra.mxu0 %v1372
        %1382 = vmatprep.subr.bf16.mxu0 0
        %1383 = vmatpush1.bf16.xpose.msra.mxu0 0
        %1384 = vmatprep.subr.bf16.mxu0 0
        %1385 = vmatpush1.bf16.xpose.msra.mxu0 0
        %1386 = vmatprep.subr.bf16.mxu0 0
        %1387 = vmatpush1.bf16.xpose.msra.mxu0 0
        %1388 = vmatprep.subr.bf16.mxu0 0
        %1389 = vmatpush1.bf16.xpose.msra.mxu0 0
        %1390 = vmatprep.subr.bf16.mxu0 0
        %1391 = vmatpush1.bf16.xpose.msra.mxu0 0
        %1392 = vmatprep.subr.bf16.mxu0 0
        %1393 = vmatpush1.bf16.xpose.msra.mxu0 0
        %1394 = vmatprep.subr.bf16.mxu0 0
        %1395 = vmatpush1.bf16.xpose.msra.mxu0 0
        %1396 = vmatprep.subr.bf16.mxu0 0
        %1397 = vmatpush1.bf16.xpose.msra.mxu0 0
        %1398 = vmatprep.subr.bf16.mxu0 0
        %1399 = vmatpush1.bf16.xpose.msra.mxu0 0
        %1400 = vmatprep.subr.bf16.mxu0 0
        %1401 = vmatpush1.bf16.xpose.msra.mxu0 0
        %1402 = vmatprep.subr.bf16.mxu0 0
        %1403 = vmatpush1.bf16.xpose.msra.mxu0 0
        %1404 = vmatprep.subr.bf16.mxu0 0
        %1405 = vmatpush1.bf16.xpose.msra.mxu0 0
        %1406 = vmatprep.mubr.bf16.mxu0 0
        %1407 = vmatmul.mubr.bf16.gmra.mrb[0].mxu0 %v1357
        %v1408 = vpop.f32.mrb[0].mxu0
        %v1409 = vadd.f32 0.0, %v1408
        %v1410 = vpop.f32.mrb[0].mxu0
        %v1411 = vpop.f32.mrb[0].mxu0
        %v1412 = vadd.f32 0.0, %v1411
        %v1413 = vpop.f32.mrb[0].mxu0
        %1414 = vmatprep.mubr.bf16.mxu0 0
        %1415 = vmatmul.mubr.bf16.gmra.mrb[0].mxu0 %v1360
        %v1416 = vpop.f32.mrb[0].mxu0
        %v1417 = vadd.f32 0.0, %v1416
        %v1418 = vpop.f32.mrb[0].mxu0
        %v1419 = vpop.f32.mrb[0].mxu0
        %v1420 = vadd.f32 0.0, %v1419
        %v1421 = vpop.f32.mrb[0].mxu0
        %1422 = vdwg.mxu0
        %v1423 = vsel %vm810, %v1409, -inf
        %1424 = vmax.xlane.f32.xlu0 %v1423
        %v1425 = vpop.xlane.xlu0 %1424
        %v1426 = vsel %vm810, %v1412, -inf
        %1427 = vmax.xlane.f32.xlu0 %v1426
        %v1428 = vpop.xlane.xlu0 %1427
        %v1429 = vsel %vm810, %v1417, -inf
        %1430 = vmax.xlane.f32.xlu0 %v1429
        %v1431 = vpop.xlane.xlu0 %1430
        %v1432 = vsel %vm810, %v1420, -inf
        %1433 = vmax.xlane.f32.xlu0 %v1432
        %v1434 = vpop.xlane.xlu0 %1433
        %v1435 = vsub.f32 %v1409, %v1425
        %v1436 = vsub.f32 %v1412, %v1428
        %v1437 = vsub.f32 %v1417, %v1431
        %v1438 = vsub.f32 %v1420, %v1434
        %v1439 = vmul.f32 %v1435, 1.442695
        %v1440 = vpow.pop %v1439
        %v1441 = vmul.f32 %v1436, 1.442695
        %v1442 = vpow.pop %v1441
        %v1443 = vmul.f32 %v1437, 1.442695
        %v1444 = vpow.pop %v1443
        %v1445 = vmul.f32 %v1438, 1.442695
        %v1446 = vpow.pop %v1445
        %v1447 = vsel %vm810, %v1440, 0.0
        %1448 = vadd.xlane.f32.xlu0 %v1447
        %v1449 = vpop.xlane.xlu0 %1448
        %v1450 = vsel %vm810, %v1442, 0.0
        %1451 = vadd.xlane.f32.xlu0 %v1450
        %v1452 = vpop.xlane.xlu0 %1451
        %v1453 = vsel %vm810, %v1444, 0.0
        %1454 = vadd.xlane.f32.xlu0 %v1453
        %v1455 = vpop.xlane.xlu0 %1454
        %v1456 = vsel %vm810, %v1446, 0.0
        %1457 = vadd.xlane.f32.xlu0 %v1456
        %v1458 = vpop.xlane.xlu0 %1457
        %v1459 = vrcp.pop %v1449
        %v1460 = vrcp.pop %v1452
        %v1461 = vrcp.pop %v1455
        %v1462 = vrcp.pop %v1458
        %v1463 = vmul.f32 %v1440, %v1459
        %v1464 = vmul.f32 %v1442, %v1460
        %v1465 = vmul.f32 %v1444, %v1461
        %v1466 = vmul.f32 %v1446, %v1462
        %v1467 = vpack.c.bf16 %v1464, %v1463
        %v1468 = vpack.c.bf16 %v1466, %v1465
        %1469 = vrot.lane.b32.xlu0 %v738, 72
        %v1470 = vpop.permute.xlu0 %1469
        %1471 = vrot.lane.b32.xlu0 %v739, 72
        %v1472 = vpop.permute.xlu0 %1471
        %1473 = vrot.lane.b32.xlu0 %v740, 72
        %v1474 = vpop.permute.xlu0 %1473
        %1475 = vrot.lane.b32.xlu0 %v741, 72
        %v1476 = vpop.permute.xlu0 %1475
        %v1482 = vsel %vm810, %v1467, 0
        %v1485 = vsel %vm810, %v1468, 0
        %1487 = vmatprep.subr.bf16.mxu0 0
        %1488 = vmatpush1.bf16.msra.mxu0 %v1470
        %1489 = vmatprep.subr.bf16.mxu0 0
        %1490 = vmatpush1.bf16.msra.mxu0 %v1472
        %1491 = vmatprep.subr.bf16.mxu0 0
        %1492 = vmatpush1.bf16.msra.mxu0 %v1474
        %1493 = vmatprep.subr.bf16.mxu0 0
        %1494 = vmatpush1.bf16.msra.mxu0 %v1476
        %1495 = vmatprep.subr.bf16.mxu0 0
        %1496 = vmatpush1.bf16.msra.mxu0 0
        %1497 = vmatprep.subr.bf16.mxu0 0
        %1498 = vmatpush1.bf16.msra.mxu0 0
        %1499 = vmatprep.subr.bf16.mxu0 0
        %1500 = vmatpush1.bf16.msra.mxu0 0
        %1501 = vmatprep.subr.bf16.mxu0 0
        %1502 = vmatpush1.bf16.msra.mxu0 0
        %1503 = vmatprep.subr.bf16.mxu0 0
        %1504 = vmatpush1.bf16.msra.mxu0 0
        %1505 = vmatprep.subr.bf16.mxu0 0
        %1506 = vmatpush1.bf16.msra.mxu0 0
        %1507 = vmatprep.subr.bf16.mxu0 0
        %1508 = vmatpush1.bf16.msra.mxu0 0
        %1509 = vmatprep.subr.bf16.mxu0 0
        %1510 = vmatpush1.bf16.msra.mxu0 0
        %1511 = vmatprep.subr.bf16.mxu0 0
        %1512 = vmatpush1.bf16.msra.mxu0 0
        %1513 = vmatprep.subr.bf16.mxu0 0
        %1514 = vmatpush1.bf16.msra.mxu0 0
        %1515 = vmatprep.subr.bf16.mxu0 0
        %1516 = vmatpush1.bf16.msra.mxu0 0
        %1517 = vmatprep.subr.bf16.mxu0 0
        %1518 = vmatpush1.bf16.msra.mxu0 0
        %1519 = vmatprep.mubr.bf16.mxu0 0
        %1520 = vmatmul.mubr.bf16.gmra.mrb[0].mxu0 %v1482
        %v1521 = vpop.f32.mrb[0].mxu0
        %v1522 = vadd.f32 0.0, %v1521
        %v1523 = vpop.f32.mrb[0].mxu0
        %v1524 = vpop.f32.mrb[0].mxu0
        %v1525 = vadd.f32 0.0, %v1524
        %v1526 = vpop.f32.mrb[0].mxu0
        %1527 = vmatprep.mubr.bf16.mxu0 0
        %1528 = vmatmul.mubr.bf16.gmra.mrb[0].mxu0 %v1485
        %v1529 = vpop.f32.mrb[0].mxu0
        %v1530 = vadd.f32 0.0, %v1529
        %v1531 = vpop.f32.mrb[0].mxu0
        %v1532 = vpop.f32.mrb[0].mxu0
        %v1533 = vadd.f32 0.0, %v1532
        %v1534 = vpop.f32.mrb[0].mxu0
        %1535 = vdwg.mxu0
        %v1536 = vpack.c.bf16 %v1525, %v1522
        %v1537 = vpack.c.bf16 %v1533, %v1530
        %1540 = vrot.lane.b32.xlu0 %v1536, 24
        %v1541 = vpop.permute.xlu0 %1540
        %1542 = vrot.lane.b32.xlu0 %v1537, 24
        %v1543 = vpop.permute.xlu0 %1542
        %vm1546 = vcmask 261312
        %1547 = vst.msk [vmem:[#allocation4] sm:$0xff] %vm1546, %v1541
        %1548 = vst.msk [vmem:[#allocation4 + $0x8] sm:$0xff] %vm1546, %v1543
        %v1549 = vld [vmem:[#allocation4] sm:$0xff]
        %v1550 = vld [vmem:[#allocation4 + $0x8] sm:$0xff]
        %v1551 = vld [vmem:[#allocation14] sm:$0xf]
        %v1552 = vld [vmem:[#allocation14 + $0x4] sm:$0xf]
        %v1553 = vld [vmem:[#allocation14 + $0x8] sm:$0xf]
        %v1554 = vld [vmem:[#allocation14 + $0xc] sm:$0xf]
        %v1555 = vld [vmem:[#allocation16] sm:$0x1]
        %v1557 = vlaneseq
        %v1558 = vshrl.u32 %v1557, 7
        %v1559 = vsub.s32 0, %v1558
        %v1560 = vrot.slane %v1555, %v1559
        %v1566 = vunpack.c.l.b16 %v1551
        %v1567 = vunpack.c.l.b16 %v1552
        %v1568 = vunpack.c.l.b16 %v1553
        %v1569 = vunpack.c.l.b16 %v1554
        %v1570 = vpack.c.b16 %v1567, %v1566
        %v1571 = vpack.c.b16 %v1569, %v1568
        %v1575 = vsel %vm680, %v1549, 0
        %v1578 = vsel %vm680, %v1550, 0
        %1580 = vmatprep.subr.bf16.mxu0 0
        %1581 = vmatpush1.bf16.msra.mxu0 %v1570
        %1582 = vmatprep.subr.bf16.mxu0 0
        %1583 = vmatpush1.bf16.msra.mxu0 %v1571
        %1584 = vmatprep.subr.bf16.mxu0 0
        %1585 = vmatpush1.bf16.msra.mxu0 0
        %1586 = vmatprep.subr.bf16.mxu0 0
        %1587 = vmatpush1.bf16.msra.mxu0 0
        %1588 = vmatprep.subr.bf16.mxu0 0
        %1589 = vmatpush1.bf16.msra.mxu0 0
        %1590 = vmatprep.subr.bf16.mxu0 0
        %1591 = vmatpush1.bf16.msra.mxu0 0
        %1592 = vmatprep.subr.bf16.mxu0 0
        %1593 = vmatpush1.bf16.msra.mxu0 0
        %1594 = vmatprep.subr.bf16.mxu0 0
        %1595 = vmatpush1.bf16.msra.mxu0 0
        %1596 = vmatprep.subr.bf16.mxu0 0
        %1597 = vmatpush1.bf16.msra.mxu0 0
        %1598 = vmatprep.subr.bf16.mxu0 0
        %1599 = vmatpush1.bf16.msra.mxu0 0
        %1600 = vmatprep.subr.bf16.mxu0 0
        %1601 = vmatpush1.bf16.msra.mxu0 0
        %1602 = vmatprep.subr.bf16.mxu0 0
        %1603 = vmatpush1.bf16.msra.mxu0 0
        %1604 = vmatprep.subr.bf16.mxu0 0
        %1605 = vmatpush1.bf16.msra.mxu0 0
        %1606 = vmatprep.subr.bf16.mxu0 0
        %1607 = vmatpush1.bf16.msra.mxu0 0
        %1608 = vmatprep.subr.bf16.mxu0 0
        %1609 = vmatpush1.bf16.msra.mxu0 0
        %1610 = vmatprep.subr.bf16.mxu0 0
        %1611 = vmatpush1.bf16.msra.mxu0 0
        %1612 = vmatprep.mubr.bf16.mxu0 0
        %1613 = vmatmul.mubr.bf16.gmra.mrb[0].mxu0 %v1575
        %v1614 = vpop.f32.mrb[0].mxu0
        %v1615 = vadd.f32 %v1560, %v1614
        %v1616 = vpop.f32.mrb[0].mxu0
        %v1617 = vpop.f32.mrb[0].mxu0
        %v1618 = vadd.f32 %v1560, %v1617
        %v1619 = vpop.f32.mrb[0].mxu0
        %1620 = vmatprep.mubr.bf16.mxu0 0
        %1621 = vmatmul.mubr.bf16.gmra.mrb[0].mxu0 %v1578
        %v1622 = vpop.f32.mrb[0].mxu0
        %v1623 = vadd.f32 %v1560, %v1622
        %v1624 = vpop.f32.mrb[0].mxu0
        %v1625 = vpop.f32.mrb[0].mxu0
        %v1626 = vadd.f32 %v1560, %v1625
        %v1627 = vpop.f32.mrb[0].mxu0
        %1628 = vdwg.mxu0
        %v1629 = vadd.f32 %v654, %v1615
        %v1630 = vadd.f32 %v655, %v1618
        %v1631 = vadd.f32 %v656, %v1623
        %v1632 = vadd.f32 %v657, %v1626
        %1633 = vst.msk [vmem:[%s391] sm:$0xff] %vm680, %v1629
        %1634 = vst.msk [vmem:[%s391 + $0x8] sm:$0xff] %vm680, %v1630
        %1635 = vst.msk [vmem:[%s391 + $0x10] sm:$0xff] %vm680, %v1631
        %1636 = vst.msk [vmem:[%s391 + $0x18] sm:$0xff] %vm680, %v1632
        %s1637 = sand.u32 %s201, 1
        %s1638 = scalar_lea.sflag [#allocation7], %s1637
        %s1639 = sand.u32 %s201, 1
        %s1640 = smul.addr %s1639, 32
        %s1641 = scalar_lea.vmem [#allocation17], %s1640
        // Predicated region
        $region81: #{tpu_custom_call.1} parent=47 // pred_check
          %p1642 = pneg %p211
        $region82: #{tpu_custom_call.1} parent=47 // pred_check_branch
          %1644 = sbr.rel (%p1642) target = $region84
        $region83: #{tpu_custom_call.1} parent=47 // pred_region
          %s1645 = smul.u32 4, %s32
          %s1647 = ssub.s32 512, 512
          %1648 = vsyncadd %s1638, %s1647
          %s1649 = smul.addr %s31, 8
          %s1650 = sadd.s32 %s1645, %s1649
          %s1651 = smul.addr %s1650, 128
          %s1652 = scalar_lea.hbm %s7, %s1651
          %s1653 = sshll.u32 %s1641, 4
          %s1654 = int_to_ptr.vmem [resolvable:$true] %s1653
          %1659 = dma.vmem_to_hbm [thread:$0]  %s1654, 512, %s1652, %s1638, 128, 128, 8
        $region84: #{tpu_custom_call.1} parent=47 // pred_fallthru
          _
      $region48: #{tpu_custom_call.1} parent=5 // pred_fallthru
        _
      %p1660 = scmp.le.s32.totalorder 2, %s22
      // Predicated region
      $region85: #{tpu_custom_call.1} parent=5 // pred_check
        %p1661 = pneg %p1660
      $region86: #{tpu_custom_call.1} parent=5 // pred_check_branch
        %1663 = sbr.rel (%p1661) target = $region88
      $region87: #{tpu_custom_call.1} parent=5 // pred_region
        %s1664 = ssub.s32 %s22, 2
        // Predicated region
        $region89: #{tpu_custom_call.1} parent=87 // pred_check
          %p1665 = pneg %p217
        $region90: #{tpu_custom_call.1} parent=87 // pred_check_branch
          %1667 = sbr.rel (%p1665) target = $region92
        $region91: #{tpu_custom_call.1} parent=87 // pred_region
          %s1668 = sand.u32 %s202, 1
          %s1669 = scalar_lea.sflag [#allocation7], %s1668
          %s1670 = sand.u32 %s202, 1
          %s1671 = smul.addr %s1670, 32
          %s1672 = scalar_lea.vmem [#allocation17], %s1671
          %1673 = dma.done %s1669, 512
        $region92: #{tpu_custom_call.1} parent=87 // pred_fallthru
          _
      $region88: #{tpu_custom_call.1} parent=5 // pred_fallthru
        _
    $region6: #{tpu_custom_call.1} parent=1 // loop_footer
      %s26 = sadd.s32 1, %s22
    $region7: #{tpu_custom_call.1} parent=1 // loop_footer_branch
      %21 = sbr.rel target = $region3
    $region8: #{tpu_custom_call.1} parent=1 // loop_exit
      _
    %1674 = vsyncpa [#allocation6], 1
    %s1675 = scalar_lea.sflag [#allocation6], 1
    %1676 = vsyncpa %s1675, 1
    %1677 = vsyncpa [#allocation9], 1
    %1678 = vsyncpa [#allocation12], 1
    %1679 = vsyncpa [#allocation15], 1
    %1680 = vsyncpa [#allocation7], 1
    %s1681 = scalar_lea.sflag [#allocation7], 1
    %1682 = vsyncpa %s1681, 1

</llo_original>
